<compile_context>
chip_gen: v5e
topology: v5e:2x2
jax: 0.10.0
libtpu: 0.0.40
codegen_flags: <defaults>
</compile_context>

<pallas_src>
import math
import numpy as np
import jax
import jax.numpy as jnp
from jax.experimental import pallas as pl
from jax.experimental.pallas import tpu as pltpu

# ---- small, module-consistent shapes ----
B = 2            # batch
T = 8            # sequence length (<= block_size)
IN_DIM = 16      # in_dim
C = 32           # discriminator_dim (inner dim)
H = 4            # discriminator_nhead (C % H == 0)
HD = C // H
BT = B * T
EPS = 1e-5
BLOCK_SIZE = 64  # discriminator_block_size (only used for the T <= block_size check)
CLS_PAD = 128    # lane-dense classifier output width (real logit lives in column 0)
NEG_BIAS = -1e9  # finite additive causal-mask bias (exp underflows to exactly 0 in f32)

# constants-slab row offsets (slab width = C; everything narrower is zero-padded)
R_PE = 0              # rows [0, BT)            : positional encoding, tiled per batch element
R_LN = BT             # rows [BT, BT+3)         : ln1 / ln2 / lnf weights
R_BIAS = BT + 3       # rows [R_BIAS, R_BIAS+T) : causal additive bias (cols [0, T))
R_POOL = BT + 3 + T   # rows [R_POOL, R_POOL+B) : block-diag pooling matrix (cols [0, BT))
N_CONST = R_POOL + B

assert BT <= C and T <= C, "constants slab packs bias/pooling rows into width C"


def _new_gelu(x):
    # GPT-2 tanh approximation of GELU (f32 on the VPU/EUP — no bf16 elementwise on v5e)
    return 0.5 * x * (1.0 + jnp.tanh(math.sqrt(2.0 / math.pi) * (x + 0.044715 * x * x * x)))


def _layernorm(x, w):
    # LayerNorm(dim, bias=False): weight only, eps=1e-5
    mu = jnp.mean(x, axis=-1, keepdims=True)
    var = jnp.mean(jnp.square(x - mu), axis=-1, keepdims=True)
    return (x - mu) * jax.lax.rsqrt(var + EPS) * w


def disc_kernel(x_ref, consts_ref, w_in_ref, w_qkv_ref, w_ao_ref,
                w_fc_ref, w_pr_ref, w_cls_ref, out_ref):
    # Single invocation, whole batch: activations are (BT, ·) row slabs.
    consts = consts_ref[...]
    pe = consts[R_PE:R_PE + BT]                  # (BT, C)
    ln1 = consts[R_LN + 0:R_LN + 1]              # (1, C)
    ln2 = consts[R_LN + 1:R_LN + 2]              # (1, C)
    lnf = consts[R_LN + 2:R_LN + 3]              # (1, C)
    bias = consts[R_BIAS:R_BIAS + T, 0:T]        # (T, T) causal additive bias (0 / -1e9)
    pool = consts[R_POOL:R_POOL + B, 0:BT]       # (B, BT) block-diag (1-pad)/x_sz weights

    # ---- input projection + sinusoidal positional encoding (dropout p=0 -> no-op) ----
    h = jnp.dot(x_ref[...], w_in_ref[...], preferred_element_type=jnp.float32) + pe  # (BT, C)

    # ---- transformer Block: x + attn(ln1(x)) ----
    hn = _layernorm(h, ln1)
    qkv = jnp.dot(hn, w_qkv_ref[...], preferred_element_type=jnp.float32)            # (BT, 3C)

    # Per-(batch, head) attention with static slices of the qkv slab:
    # no reshape/transpose relayouts, no materialized q/k/v copies.
    y_rows = []
    for b in range(B):
        qkv_b = qkv[b * T:(b + 1) * T]           # (T, 3C) static sublane slice
        y_heads = []
        for hh in range(H):
            q_bh = qkv_b[:, 0 * C + hh * HD:0 * C + (hh + 1) * HD]   # (T, HD), pre-scaled
            k_bh = qkv_b[:, 1 * C + hh * HD:1 * C + (hh + 1) * HD]
            v_bh = qkv_b[:, 2 * C + hh * HD:2 * C + (hh + 1) * HD]
            s = jnp.einsum('td,sd->ts', q_bh, k_bh,
                           preferred_element_type=jnp.float32)        # (T, T)
            s = s + bias
            m = jnp.max(s, axis=-1, keepdims=True)
            e = jnp.exp(s - m)
            inv = pl.reciprocal(jnp.sum(e, axis=-1, keepdims=True), approx=False)
            y_heads.append(
                jnp.dot(e, v_bh, preferred_element_type=jnp.float32) * inv)  # (T, HD)
        y_rows.append(jnp.concatenate(y_heads, axis=-1))                     # (T, C)
    y = jnp.concatenate(y_rows, axis=0)                                      # (BT, C)

    h = h + jnp.dot(y, w_ao_ref[...], preferred_element_type=jnp.float32)    # residual 1

    # ---- transformer Block: x + mlp(ln2(x)) ----
    hn = _layernorm(h, ln2)
    f = _new_gelu(jnp.dot(hn, w_fc_ref[...], preferred_element_type=jnp.float32))    # (BT, 4C)
    h = h + jnp.dot(f, w_pr_ref[...], preferred_element_type=jnp.float32)            # residual 2

    # ---- final LayerNorm ----
    h = _layernorm(h, lnf)

    # ---- padding-masked mean pooling (block-diag matmul over the whole batch) ----
    pooled = jnp.dot(pool, h, preferred_element_type=jnp.float32)                    # (B, C)

    # ---- binary classifier head: lane-dense (B, 128) store, real logit in column 0 ----
    out_ref[...] = jnp.dot(pooled, w_cls_ref[...], preferred_element_type=jnp.float32)


def make_params(key):
    ks = jax.random.split(key, 6)
    init = lambda k, shape: 0.02 * jax.random.normal(k, shape, jnp.float32)

    # sinusoidal positional encoding (first T rows of the max_len table)
    pos = jnp.arange(T, dtype=jnp.float32)[:, None]
    div = jnp.exp(jnp.arange(0, C, 2, dtype=jnp.float32) * (-math.log(10000.0) / C))
    pe = jnp.zeros((T, C), jnp.float32)
    pe = pe.at[:, 0::2].set(jnp.sin(pos * div)).at[:, 1::2].set(jnp.cos(pos * div))

    return dict(
        pe=pe,
        w_in=init(ks[0], (IN_DIM, C)),        # nn.Linear(in_dim, inner_dim, bias=False)
        w_qkv=init(ks[1], (C, 3 * C)),        # c_attn fused (q|k|v columns)
        w_ao=init(ks[2], (C, C)),             # attn c_proj
        ln1=jnp.ones((1, C), jnp.float32),
        ln2=jnp.ones((1, C), jnp.float32),
        w_fc=init(ks[3], (C, 4 * C)),         # mlp c_fc
        w_pr=init(ks[4], (4 * C, C)),         # mlp c_proj
        lnf=jnp.ones((1, C), jnp.float32),
        w_cls=init(ks[5], (C, 1)),            # bin_classifier (bias=False)
    )


def transformer_discriminator(x, padding_mask, p):
    assert x.shape[1] <= BLOCK_SIZE
    x2 = x.reshape(BT, IN_DIM)

    # Fold padding mask + mean normalization into a (B, BT) block-diagonal pooling matrix.
    # (A fully-padded row gives x_sz == 0 -> NaN, same behavior as the PyTorch module.)
    valid = 1.0 - padding_mask.astype(jnp.float32)                    # (B, T)
    x_sz = jnp.sum(valid, axis=-1, keepdims=True)                     # (B, 1)
    pool_rows = valid / x_sz                                          # (B, T)
    pool_mat = (jnp.eye(B, dtype=jnp.float32)[:, :, None]
                * pool_rows[:, None, :]).reshape(B, BT)               # (B, BT)

    # Causal additive bias (0 where allowed, -1e9 where masked).
    row = jnp.arange(T)[:, None]
    col = jnp.arange(T)[None, :]
    causal_bias = jnp.where(col <= row, 0.0, NEG_BIAS).astype(jnp.float32)   # (T, T)

    # Single constants slab: pe (tiled per batch element) | ln weights | causal bias | pooling.
    consts = jnp.concatenate([
        jnp.tile(p['pe'], (B, 1)),                                    # (BT, C)
        p['ln1'], p['ln2'], p['lnf'],                                 # (3, C)
        jnp.pad(causal_bias, ((0, 0), (0, C - T))),                   # (T, C)
        jnp.pad(pool_mat, ((0, 0), (0, C - BT))),                     # (B, C)
    ], axis=0)
    assert consts.shape == (N_CONST, C)

    # Fold the 1/sqrt(HD) attention-score scale into the q columns of the fused qkv weight.
    col_scale = jnp.concatenate([jnp.full((C,), 1.0 / math.sqrt(HD), jnp.float32),
                                 jnp.ones((2 * C,), jnp.float32)])
    w_qkv = p['w_qkv'] * col_scale[None, :]

    # Lane-dense classifier weight: pad (C, 1) -> (C, 128); column 0 is the real weight.
    w_cls = jnp.pad(p['w_cls'], ((0, 0), (0, CLS_PAD - 1)))

    # Whole-batch single invocation: every operand is a full-array VMEM block (no grid,
    # no per-step pipeline overhead). At the real config (C=256, depth>1, T up to 1152)
    # set pltpu.CompilerParams(vmem_limit_bytes=...) and cast MXU inputs to bf16.
    vmem_spec = lambda: pl.BlockSpec(memory_space=pltpu.MemorySpace.VMEM)
    out = pl.pallas_call(
        disc_kernel,
        out_shape=jax.ShapeDtypeStruct((B, CLS_PAD), jnp.float32),
        in_specs=[vmem_spec() for _ in range(8)],
        out_specs=vmem_spec(),
    )(x2, consts, p['w_in'], w_qkv, p['w_ao'], p['w_fc'], p['w_pr'], w_cls)

    return out[:, :1]                                                  # (B, 1)


# ---- pure-JAX reference (mirrors the PyTorch forward) ----
def reference_forward(x, padding_mask, p):
    h = x @ p['w_in'] + p['pe'][None]

    def ln(z, w):
        mu = jnp.mean(z, axis=-1, keepdims=True)
        var = jnp.mean(jnp.square(z - mu), axis=-1, keepdims=True)
        return (z - mu) / jnp.sqrt(var + EPS) * w

    hn = ln(h, p['ln1'])
    qkv = hn @ p['w_qkv']
    q, k, v = jnp.split(qkv, 3, axis=-1)
    q = q.reshape(B, T, H, HD).transpose(0, 2, 1, 3)
    k = k.reshape(B, T, H, HD).transpose(0, 2, 1, 3)
    v = v.reshape(B, T, H, HD).transpose(0, 2, 1, 3)
    s = jnp.einsum('bhtd,bhsd->bhts', q, k) / math.sqrt(HD)
    mask = jnp.tril(jnp.ones((T, T), bool))
    s = jnp.where(mask, s, -jnp.inf)
    a = jax.nn.softmax(s, axis=-1)
    y = jnp.einsum('bhts,bhsd->bhtd', a, v).transpose(0, 2, 1, 3).reshape(B, T, C)
    h = h + y @ p['w_ao']
    hn = ln(h, p['ln2'])
    h = h + _new_gelu(hn @ p['w_fc']) @ p['w_pr']
    h = ln(h, p['lnf'])
    h = jnp.where(padding_mask[:, :, None], 0.0, h)
    x_sz = T - jnp.sum(padding_mask.astype(jnp.float32), axis=-1, keepdims=True)
    pooled = jnp.sum(h, axis=1) / x_sz
    return pooled @ p['w_cls']


if __name__ == "__main__":
    key = jax.random.PRNGKey(0)
    kx, kp = jax.random.split(key)
    x = jax.random.normal(kx, (B, T, IN_DIM), jnp.float32)
    # sample 0: no padding; sample 1: last 3 steps padded
    padding_mask = jnp.zeros((B, T), jnp.bool_).at[1, T - 3:].set(True)
    params = make_params(kp)

    out = transformer_discriminator(x, padding_mask, params)
    out = jax.block_until_ready(out)

    ref = reference_forward(x, padding_mask, params)
    assert out.shape == (B, 1)
    np.testing.assert_allclose(np.asarray(out), np.asarray(ref), rtol=1e-4, atol=1e-4)
    print("KERNEL_OK")
</pallas_src>

<mosaic_0001>
module attributes {stable_mosaic.version = 11 : i64} {
  func.func @disc_kernel(%arg0: memref<16x16xf32, #tpu.memory_space<vmem>>, %arg1: memref<29x32xf32, #tpu.memory_space<vmem>>, %arg2: memref<16x32xf32, #tpu.memory_space<vmem>>, %arg3: memref<32x96xf32, #tpu.memory_space<vmem>>, %arg4: memref<32x32xf32, #tpu.memory_space<vmem>>, %arg5: memref<32x128xf32, #tpu.memory_space<vmem>>, %arg6: memref<128x32xf32, #tpu.memory_space<vmem>>, %arg7: memref<32x128xf32, #tpu.memory_space<vmem>>, %arg8: memref<2x128xf32, #tpu.memory_space<vmem>>) attributes {dimension_semantics = [], scalar_prefetch = 0 : i64, scratch_operands = 0 : i64, tpu.core_type = #tpu.core_type<tc>} {
    %c0 = arith.constant 0 : index
    %c0_0 = arith.constant 0 : index
    %0 = vector.load %arg1[%c0, %c0_0] : memref<29x32xf32, #tpu.memory_space<vmem>>, vector<29x32xf32>
    %1 = vector.extract_strided_slice %0 {offsets = [0, 0], sizes = [16, 32], strides = [1, 1]} : vector<29x32xf32> to vector<16x32xf32>
    %2 = vector.extract_strided_slice %0 {offsets = [16, 0], sizes = [1, 32], strides = [1, 1]} : vector<29x32xf32> to vector<1x32xf32>
    %3 = vector.extract_strided_slice %0 {offsets = [17, 0], sizes = [1, 32], strides = [1, 1]} : vector<29x32xf32> to vector<1x32xf32>
    %4 = vector.extract_strided_slice %0 {offsets = [18, 0], sizes = [1, 32], strides = [1, 1]} : vector<29x32xf32> to vector<1x32xf32>
    %5 = vector.extract_strided_slice %0 {offsets = [19, 0], sizes = [8, 8], strides = [1, 1]} : vector<29x32xf32> to vector<8x8xf32>
    %6 = vector.extract_strided_slice %0 {offsets = [27, 0], sizes = [2, 16], strides = [1, 1]} : vector<29x32xf32> to vector<2x16xf32>
    %c0_1 = arith.constant 0 : index
    %c0_2 = arith.constant 0 : index
    %7 = vector.load %arg0[%c0_1, %c0_2] : memref<16x16xf32, #tpu.memory_space<vmem>>, vector<16x16xf32>
    %c0_3 = arith.constant 0 : index
    %c0_4 = arith.constant 0 : index
    %8 = vector.load %arg2[%c0_3, %c0_4] : memref<16x32xf32, #tpu.memory_space<vmem>>, vector<16x32xf32>
    %cst = arith.constant dense<0.000000e+00> : vector<16x32xf32>
    %9 = tpu.matmul %7, %8, %cst {dimension_numbers = #tpu.dot_dimension_numbers<[1], [0], [0], [1], [0, 0, 1, 1], [], []>} : vector<16x16xf32>, vector<16x32xf32>, vector<16x32xf32> -> vector<16x32xf32>
    %10 = arith.addf %9, %1 : vector<16x32xf32>
    %cst_5 = arith.constant dense<0.000000e+00> : vector<16xf32>
    %11 = vector.multi_reduction <add>, %10, %cst_5 [1] : vector<16x32xf32> to vector<16xf32>
    %12 = vector.shape_cast %11 : vector<16xf32> to vector<16x1xf32>
    %cst_6 = arith.constant 3.200000e+01 : f32
    %13 = vector.broadcast %cst_6 : f32 to vector<16x1xf32>
    %14 = arith.divf %12, %13 : vector<16x1xf32>
    %15 = vector.broadcast %14 : vector<16x1xf32> to vector<16x32xf32>
    %16 = arith.subf %10, %15 : vector<16x32xf32>
    %17 = arith.mulf %16, %16 : vector<16x32xf32>
    %cst_7 = arith.constant dense<0.000000e+00> : vector<16xf32>
    %18 = vector.multi_reduction <add>, %17, %cst_7 [1] : vector<16x32xf32> to vector<16xf32>
    %19 = vector.shape_cast %18 : vector<16xf32> to vector<16x1xf32>
    %cst_8 = arith.constant 3.200000e+01 : f32
    %20 = vector.broadcast %cst_8 : f32 to vector<16x1xf32>
    %21 = arith.divf %19, %20 : vector<16x1xf32>
    %22 = vector.broadcast %14 : vector<16x1xf32> to vector<16x32xf32>
    %23 = arith.subf %10, %22 : vector<16x32xf32>
    %cst_9 = arith.constant 9.99999974E-6 : f32
    %24 = vector.broadcast %cst_9 : f32 to vector<16x1xf32>
    %25 = arith.addf %21, %24 : vector<16x1xf32>
    %26 = math.rsqrt %25 : vector<16x1xf32>
    %27 = vector.broadcast %26 : vector<16x1xf32> to vector<16x32xf32>
    %28 = arith.mulf %23, %27 : vector<16x32xf32>
    %29 = vector.broadcast %2 : vector<1x32xf32> to vector<16x32xf32>
    %30 = arith.mulf %28, %29 : vector<16x32xf32>
    %c0_10 = arith.constant 0 : index
    %c0_11 = arith.constant 0 : index
    %31 = vector.load %arg3[%c0_10, %c0_11] : memref<32x96xf32, #tpu.memory_space<vmem>>, vector<32x96xf32>
    %cst_12 = arith.constant dense<0.000000e+00> : vector<16x96xf32>
    %32 = tpu.matmul %30, %31, %cst_12 {dimension_numbers = #tpu.dot_dimension_numbers<[1], [0], [0], [1], [0, 0, 1, 1], [], []>} : vector<16x32xf32>, vector<32x96xf32>, vector<16x96xf32> -> vector<16x96xf32>
    %33 = vector.extract_strided_slice %32 {offsets = [0, 0], sizes = [8, 96], strides = [1, 1]} : vector<16x96xf32> to vector<8x96xf32>
    %34 = vector.extract_strided_slice %33 {offsets = [0, 0], sizes = [8, 8], strides = [1, 1]} : vector<8x96xf32> to vector<8x8xf32>
    %35 = vector.extract_strided_slice %33 {offsets = [0, 32], sizes = [8, 8], strides = [1, 1]} : vector<8x96xf32> to vector<8x8xf32>
    %36 = vector.extract_strided_slice %33 {offsets = [0, 64], sizes = [8, 8], strides = [1, 1]} : vector<8x96xf32> to vector<8x8xf32>
    "tpu.trace_start"() <{level = 10 : i32, message = "td,sd->ts"}> : () -> ()
    %cst_13 = arith.constant dense<0.000000e+00> : vector<8x8xf32>
    %37 = tpu.matmul %34, %35, %cst_13 {dimension_numbers = #tpu.dot_dimension_numbers<[1], [1], [0], [0], [0, 0, 1, 0], [], []>} : vector<8x8xf32>, vector<8x8xf32>, vector<8x8xf32> -> vector<8x8xf32>
    "tpu.trace_stop"() : () -> ()
    %38 = arith.addf %37, %5 : vector<8x8xf32>
    %cst_14 = arith.constant dense<0xFF800000> : vector<8xf32>
    %39 = vector.multi_reduction <maximumf>, %38, %cst_14 [1] : vector<8x8xf32> to vector<8xf32>
    %40 = vector.shape_cast %39 : vector<8xf32> to vector<8x1xf32>
    %41 = vector.broadcast %40 : vector<8x1xf32> to vector<8x8xf32>
    %42 = arith.subf %38, %41 : vector<8x8xf32>
    %43 = math.exp %42 : vector<8x8xf32>
    %cst_15 = arith.constant dense<0.000000e+00> : vector<8xf32>
    %44 = vector.multi_reduction <add>, %43, %cst_15 [1] : vector<8x8xf32> to vector<8xf32>
    %45 = vector.shape_cast %44 : vector<8xf32> to vector<8x1xf32>
    %46 = tpu.reciprocal %45 : vector<8x1xf32> -> vector<8x1xf32>
    %cst_16 = arith.constant dense<0.000000e+00> : vector<8x8xf32>
    %47 = tpu.matmul %43, %36, %cst_16 {dimension_numbers = #tpu.dot_dimension_numbers<[1], [0], [0], [1], [0, 0, 1, 1], [], []>} : vector<8x8xf32>, vector<8x8xf32>, vector<8x8xf32> -> vector<8x8xf32>
    %48 = vector.broadcast %46 : vector<8x1xf32> to vector<8x8xf32>
    %49 = arith.mulf %47, %48 : vector<8x8xf32>
    %50 = vector.extract_strided_slice %33 {offsets = [0, 8], sizes = [8, 8], strides = [1, 1]} : vector<8x96xf32> to vector<8x8xf32>
    %51 = vector.extract_strided_slice %33 {offsets = [0, 40], sizes = [8, 8], strides = [1, 1]} : vector<8x96xf32> to vector<8x8xf32>
    %52 = vector.extract_strided_slice %33 {offsets = [0, 72], sizes = [8, 8], strides = [1, 1]} : vector<8x96xf32> to vector<8x8xf32>
    "tpu.trace_start"() <{level = 10 : i32, message = "td,sd->ts"}> : () -> ()
    %cst_17 = arith.constant dense<0.000000e+00> : vector<8x8xf32>
    %53 = tpu.matmul %50, %51, %cst_17 {dimension_numbers = #tpu.dot_dimension_numbers<[1], [1], [0], [0], [0, 0, 1, 0], [], []>} : vector<8x8xf32>, vector<8x8xf32>, vector<8x8xf32> -> vector<8x8xf32>
    "tpu.trace_stop"() : () -> ()
    %54 = arith.addf %53, %5 : vector<8x8xf32>
    %cst_18 = arith.constant dense<0xFF800000> : vector<8xf32>
    %55 = vector.multi_reduction <maximumf>, %54, %cst_18 [1] : vector<8x8xf32> to vector<8xf32>
    %56 = vector.shape_cast %55 : vector<8xf32> to vector<8x1xf32>
    %57 = vector.broadcast %56 : vector<8x1xf32> to vector<8x8xf32>
    %58 = arith.subf %54, %57 : vector<8x8xf32>
    %59 = math.exp %58 : vector<8x8xf32>
    %cst_19 = arith.constant dense<0.000000e+00> : vector<8xf32>
    %60 = vector.multi_reduction <add>, %59, %cst_19 [1] : vector<8x8xf32> to vector<8xf32>
    %61 = vector.shape_cast %60 : vector<8xf32> to vector<8x1xf32>
    %62 = tpu.reciprocal %61 : vector<8x1xf32> -> vector<8x1xf32>
    %cst_20 = arith.constant dense<0.000000e+00> : vector<8x8xf32>
    %63 = tpu.matmul %59, %52, %cst_20 {dimension_numbers = #tpu.dot_dimension_numbers<[1], [0], [0], [1], [0, 0, 1, 1], [], []>} : vector<8x8xf32>, vector<8x8xf32>, vector<8x8xf32> -> vector<8x8xf32>
    %64 = vector.broadcast %62 : vector<8x1xf32> to vector<8x8xf32>
    %65 = arith.mulf %63, %64 : vector<8x8xf32>
    %66 = vector.extract_strided_slice %33 {offsets = [0, 16], sizes = [8, 8], strides = [1, 1]} : vector<8x96xf32> to vector<8x8xf32>
    %67 = vector.extract_strided_slice %33 {offsets = [0, 48], sizes = [8, 8], strides = [1, 1]} : vector<8x96xf32> to vector<8x8xf32>
    %68 = vector.extract_strided_slice %33 {offsets = [0, 80], sizes = [8, 8], strides = [1, 1]} : vector<8x96xf32> to vector<8x8xf32>
    "tpu.trace_start"() <{level = 10 : i32, message = "td,sd->ts"}> : () -> ()
    %cst_21 = arith.constant dense<0.000000e+00> : vector<8x8xf32>
    %69 = tpu.matmul %66, %67, %cst_21 {dimension_numbers = #tpu.dot_dimension_numbers<[1], [1], [0], [0], [0, 0, 1, 0], [], []>} : vector<8x8xf32>, vector<8x8xf32>, vector<8x8xf32> -> vector<8x8xf32>
    "tpu.trace_stop"() : () -> ()
    %70 = arith.addf %69, %5 : vector<8x8xf32>
    %cst_22 = arith.constant dense<0xFF800000> : vector<8xf32>
    %71 = vector.multi_reduction <maximumf>, %70, %cst_22 [1] : vector<8x8xf32> to vector<8xf32>
    %72 = vector.shape_cast %71 : vector<8xf32> to vector<8x1xf32>
    %73 = vector.broadcast %72 : vector<8x1xf32> to vector<8x8xf32>
    %74 = arith.subf %70, %73 : vector<8x8xf32>
    %75 = math.exp %74 : vector<8x8xf32>
    %cst_23 = arith.constant dense<0.000000e+00> : vector<8xf32>
    %76 = vector.multi_reduction <add>, %75, %cst_23 [1] : vector<8x8xf32> to vector<8xf32>
    %77 = vector.shape_cast %76 : vector<8xf32> to vector<8x1xf32>
    %78 = tpu.reciprocal %77 : vector<8x1xf32> -> vector<8x1xf32>
    %cst_24 = arith.constant dense<0.000000e+00> : vector<8x8xf32>
    %79 = tpu.matmul %75, %68, %cst_24 {dimension_numbers = #tpu.dot_dimension_numbers<[1], [0], [0], [1], [0, 0, 1, 1], [], []>} : vector<8x8xf32>, vector<8x8xf32>, vector<8x8xf32> -> vector<8x8xf32>
    %80 = vector.broadcast %78 : vector<8x1xf32> to vector<8x8xf32>
    %81 = arith.mulf %79, %80 : vector<8x8xf32>
    %82 = vector.extract_strided_slice %33 {offsets = [0, 24], sizes = [8, 8], strides = [1, 1]} : vector<8x96xf32> to vector<8x8xf32>
    %83 = vector.extract_strided_slice %33 {offsets = [0, 56], sizes = [8, 8], strides = [1, 1]} : vector<8x96xf32> to vector<8x8xf32>
    %84 = vector.extract_strided_slice %33 {offsets = [0, 88], sizes = [8, 8], strides = [1, 1]} : vector<8x96xf32> to vector<8x8xf32>
    "tpu.trace_start"() <{level = 10 : i32, message = "td,sd->ts"}> : () -> ()
    %cst_25 = arith.constant dense<0.000000e+00> : vector<8x8xf32>
    %85 = tpu.matmul %82, %83, %cst_25 {dimension_numbers = #tpu.dot_dimension_numbers<[1], [1], [0], [0], [0, 0, 1, 0], [], []>} : vector<8x8xf32>, vector<8x8xf32>, vector<8x8xf32> -> vector<8x8xf32>
    "tpu.trace_stop"() : () -> ()
    %86 = arith.addf %85, %5 : vector<8x8xf32>
    %cst_26 = arith.constant dense<0xFF800000> : vector<8xf32>
    %87 = vector.multi_reduction <maximumf>, %86, %cst_26 [1] : vector<8x8xf32> to vector<8xf32>
    %88 = vector.shape_cast %87 : vector<8xf32> to vector<8x1xf32>
    %89 = vector.broadcast %88 : vector<8x1xf32> to vector<8x8xf32>
    %90 = arith.subf %86, %89 : vector<8x8xf32>
    %91 = math.exp %90 : vector<8x8xf32>
    %cst_27 = arith.constant dense<0.000000e+00> : vector<8xf32>
    %92 = vector.multi_reduction <add>, %91, %cst_27 [1] : vector<8x8xf32> to vector<8xf32>
    %93 = vector.shape_cast %92 : vector<8xf32> to vector<8x1xf32>
    %94 = tpu.reciprocal %93 : vector<8x1xf32> -> vector<8x1xf32>
    %cst_28 = arith.constant dense<0.000000e+00> : vector<8x8xf32>
    %95 = tpu.matmul %91, %84, %cst_28 {dimension_numbers = #tpu.dot_dimension_numbers<[1], [0], [0], [1], [0, 0, 1, 1], [], []>} : vector<8x8xf32>, vector<8x8xf32>, vector<8x8xf32> -> vector<8x8xf32>
    %96 = vector.broadcast %94 : vector<8x1xf32> to vector<8x8xf32>
    %97 = arith.mulf %95, %96 : vector<8x8xf32>
    %98 = tpu.concatenate %49, %65, %81, %97 in 1 : vector<8x8xf32>, vector<8x8xf32>, vector<8x8xf32>, vector<8x8xf32> -> vector<8x32xf32>
    %99 = vector.extract_strided_slice %32 {offsets = [8, 0], sizes = [8, 96], strides = [1, 1]} : vector<16x96xf32> to vector<8x96xf32>
    %100 = vector.extract_strided_slice %99 {offsets = [0, 0], sizes = [8, 8], strides = [1, 1]} : vector<8x96xf32> to vector<8x8xf32>
    %101 = vector.extract_strided_slice %99 {offsets = [0, 32], sizes = [8, 8], strides = [1, 1]} : vector<8x96xf32> to vector<8x8xf32>
    %102 = vector.extract_strided_slice %99 {offsets = [0, 64], sizes = [8, 8], strides = [1, 1]} : vector<8x96xf32> to vector<8x8xf32>
    "tpu.trace_start"() <{level = 10 : i32, message = "td,sd->ts"}> : () -> ()
    %cst_29 = arith.constant dense<0.000000e+00> : vector<8x8xf32>
    %103 = tpu.matmul %100, %101, %cst_29 {dimension_numbers = #tpu.dot_dimension_numbers<[1], [1], [0], [0], [0, 0, 1, 0], [], []>} : vector<8x8xf32>, vector<8x8xf32>, vector<8x8xf32> -> vector<8x8xf32>
    "tpu.trace_stop"() : () -> ()
    %104 = arith.addf %103, %5 : vector<8x8xf32>
    %cst_30 = arith.constant dense<0xFF800000> : vector<8xf32>
    %105 = vector.multi_reduction <maximumf>, %104, %cst_30 [1] : vector<8x8xf32> to vector<8xf32>
    %106 = vector.shape_cast %105 : vector<8xf32> to vector<8x1xf32>
    %107 = vector.broadcast %106 : vector<8x1xf32> to vector<8x8xf32>
    %108 = arith.subf %104, %107 : vector<8x8xf32>
    %109 = math.exp %108 : vector<8x8xf32>
    %cst_31 = arith.constant dense<0.000000e+00> : vector<8xf32>
    %110 = vector.multi_reduction <add>, %109, %cst_31 [1] : vector<8x8xf32> to vector<8xf32>
    %111 = vector.shape_cast %110 : vector<8xf32> to vector<8x1xf32>
    %112 = tpu.reciprocal %111 : vector<8x1xf32> -> vector<8x1xf32>
    %cst_32 = arith.constant dense<0.000000e+00> : vector<8x8xf32>
    %113 = tpu.matmul %109, %102, %cst_32 {dimension_numbers = #tpu.dot_dimension_numbers<[1], [0], [0], [1], [0, 0, 1, 1], [], []>} : vector<8x8xf32>, vector<8x8xf32>, vector<8x8xf32> -> vector<8x8xf32>
    %114 = vector.broadcast %112 : vector<8x1xf32> to vector<8x8xf32>
    %115 = arith.mulf %113, %114 : vector<8x8xf32>
    %116 = vector.extract_strided_slice %99 {offsets = [0, 8], sizes = [8, 8], strides = [1, 1]} : vector<8x96xf32> to vector<8x8xf32>
    %117 = vector.extract_strided_slice %99 {offsets = [0, 40], sizes = [8, 8], strides = [1, 1]} : vector<8x96xf32> to vector<8x8xf32>
    %118 = vector.extract_strided_slice %99 {offsets = [0, 72], sizes = [8, 8], strides = [1, 1]} : vector<8x96xf32> to vector<8x8xf32>
    "tpu.trace_start"() <{level = 10 : i32, message = "td,sd->ts"}> : () -> ()
    %cst_33 = arith.constant dense<0.000000e+00> : vector<8x8xf32>
    %119 = tpu.matmul %116, %117, %cst_33 {dimension_numbers = #tpu.dot_dimension_numbers<[1], [1], [0], [0], [0, 0, 1, 0], [], []>} : vector<8x8xf32>, vector<8x8xf32>, vector<8x8xf32> -> vector<8x8xf32>
    "tpu.trace_stop"() : () -> ()
    %120 = arith.addf %119, %5 : vector<8x8xf32>
    %cst_34 = arith.constant dense<0xFF800000> : vector<8xf32>
    %121 = vector.multi_reduction <maximumf>, %120, %cst_34 [1] : vector<8x8xf32> to vector<8xf32>
    %122 = vector.shape_cast %121 : vector<8xf32> to vector<8x1xf32>
    %123 = vector.broadcast %122 : vector<8x1xf32> to vector<8x8xf32>
    %124 = arith.subf %120, %123 : vector<8x8xf32>
    %125 = math.exp %124 : vector<8x8xf32>
    %cst_35 = arith.constant dense<0.000000e+00> : vector<8xf32>
    %126 = vector.multi_reduction <add>, %125, %cst_35 [1] : vector<8x8xf32> to vector<8xf32>
    %127 = vector.shape_cast %126 : vector<8xf32> to vector<8x1xf32>
    %128 = tpu.reciprocal %127 : vector<8x1xf32> -> vector<8x1xf32>
    %cst_36 = arith.constant dense<0.000000e+00> : vector<8x8xf32>
    %129 = tpu.matmul %125, %118, %cst_36 {dimension_numbers = #tpu.dot_dimension_numbers<[1], [0], [0], [1], [0, 0, 1, 1], [], []>} : vector<8x8xf32>, vector<8x8xf32>, vector<8x8xf32> -> vector<8x8xf32>
    %130 = vector.broadcast %128 : vector<8x1xf32> to vector<8x8xf32>
    %131 = arith.mulf %129, %130 : vector<8x8xf32>
    %132 = vector.extract_strided_slice %99 {offsets = [0, 16], sizes = [8, 8], strides = [1, 1]} : vector<8x96xf32> to vector<8x8xf32>
    %133 = vector.extract_strided_slice %99 {offsets = [0, 48], sizes = [8, 8], strides = [1, 1]} : vector<8x96xf32> to vector<8x8xf32>
    %134 = vector.extract_strided_slice %99 {offsets = [0, 80], sizes = [8, 8], strides = [1, 1]} : vector<8x96xf32> to vector<8x8xf32>
    "tpu.trace_start"() <{level = 10 : i32, message = "td,sd->ts"}> : () -> ()
    %cst_37 = arith.constant dense<0.000000e+00> : vector<8x8xf32>
    %135 = tpu.matmul %132, %133, %cst_37 {dimension_numbers = #tpu.dot_dimension_numbers<[1], [1], [0], [0], [0, 0, 1, 0], [], []>} : vector<8x8xf32>, vector<8x8xf32>, vector<8x8xf32> -> vector<8x8xf32>
    "tpu.trace_stop"() : () -> ()
    %136 = arith.addf %135, %5 : vector<8x8xf32>
    %cst_38 = arith.constant dense<0xFF800000> : vector<8xf32>
    %137 = vector.multi_reduction <maximumf>, %136, %cst_38 [1] : vector<8x8xf32> to vector<8xf32>
    %138 = vector.shape_cast %137 : vector<8xf32> to vector<8x1xf32>
    %139 = vector.broadcast %138 : vector<8x1xf32> to vector<8x8xf32>
    %140 = arith.subf %136, %139 : vector<8x8xf32>
    %141 = math.exp %140 : vector<8x8xf32>
    %cst_39 = arith.constant dense<0.000000e+00> : vector<8xf32>
    %142 = vector.multi_reduction <add>, %141, %cst_39 [1] : vector<8x8xf32> to vector<8xf32>
    %143 = vector.shape_cast %142 : vector<8xf32> to vector<8x1xf32>
    %144 = tpu.reciprocal %143 : vector<8x1xf32> -> vector<8x1xf32>
    %cst_40 = arith.constant dense<0.000000e+00> : vector<8x8xf32>
    %145 = tpu.matmul %141, %134, %cst_40 {dimension_numbers = #tpu.dot_dimension_numbers<[1], [0], [0], [1], [0, 0, 1, 1], [], []>} : vector<8x8xf32>, vector<8x8xf32>, vector<8x8xf32> -> vector<8x8xf32>
    %146 = vector.broadcast %144 : vector<8x1xf32> to vector<8x8xf32>
    %147 = arith.mulf %145, %146 : vector<8x8xf32>
    %148 = vector.extract_strided_slice %99 {offsets = [0, 24], sizes = [8, 8], strides = [1, 1]} : vector<8x96xf32> to vector<8x8xf32>
    %149 = vector.extract_strided_slice %99 {offsets = [0, 56], sizes = [8, 8], strides = [1, 1]} : vector<8x96xf32> to vector<8x8xf32>
    %150 = vector.extract_strided_slice %99 {offsets = [0, 88], sizes = [8, 8], strides = [1, 1]} : vector<8x96xf32> to vector<8x8xf32>
    "tpu.trace_start"() <{level = 10 : i32, message = "td,sd->ts"}> : () -> ()
    %cst_41 = arith.constant dense<0.000000e+00> : vector<8x8xf32>
    %151 = tpu.matmul %148, %149, %cst_41 {dimension_numbers = #tpu.dot_dimension_numbers<[1], [1], [0], [0], [0, 0, 1, 0], [], []>} : vector<8x8xf32>, vector<8x8xf32>, vector<8x8xf32> -> vector<8x8xf32>
    "tpu.trace_stop"() : () -> ()
    %152 = arith.addf %151, %5 : vector<8x8xf32>
    %cst_42 = arith.constant dense<0xFF800000> : vector<8xf32>
    %153 = vector.multi_reduction <maximumf>, %152, %cst_42 [1] : vector<8x8xf32> to vector<8xf32>
    %154 = vector.shape_cast %153 : vector<8xf32> to vector<8x1xf32>
    %155 = vector.broadcast %154 : vector<8x1xf32> to vector<8x8xf32>
    %156 = arith.subf %152, %155 : vector<8x8xf32>
    %157 = math.exp %156 : vector<8x8xf32>
    %cst_43 = arith.constant dense<0.000000e+00> : vector<8xf32>
    %158 = vector.multi_reduction <add>, %157, %cst_43 [1] : vector<8x8xf32> to vector<8xf32>
    %159 = vector.shape_cast %158 : vector<8xf32> to vector<8x1xf32>
    %160 = tpu.reciprocal %159 : vector<8x1xf32> -> vector<8x1xf32>
    %cst_44 = arith.constant dense<0.000000e+00> : vector<8x8xf32>
    %161 = tpu.matmul %157, %150, %cst_44 {dimension_numbers = #tpu.dot_dimension_numbers<[1], [0], [0], [1], [0, 0, 1, 1], [], []>} : vector<8x8xf32>, vector<8x8xf32>, vector<8x8xf32> -> vector<8x8xf32>
    %162 = vector.broadcast %160 : vector<8x1xf32> to vector<8x8xf32>
    %163 = arith.mulf %161, %162 : vector<8x8xf32>
    %164 = tpu.concatenate %115, %131, %147, %163 in 1 : vector<8x8xf32>, vector<8x8xf32>, vector<8x8xf32>, vector<8x8xf32> -> vector<8x32xf32>
    %165 = tpu.concatenate %98, %164 in 0 : vector<8x32xf32>, vector<8x32xf32> -> vector<16x32xf32>
    %c0_45 = arith.constant 0 : index
    %c0_46 = arith.constant 0 : index
    %166 = vector.load %arg4[%c0_45, %c0_46] : memref<32x32xf32, #tpu.memory_space<vmem>>, vector<32x32xf32>
    %cst_47 = arith.constant dense<0.000000e+00> : vector<16x32xf32>
    %167 = tpu.matmul %165, %166, %cst_47 {dimension_numbers = #tpu.dot_dimension_numbers<[1], [0], [0], [1], [0, 0, 1, 1], [], []>} : vector<16x32xf32>, vector<32x32xf32>, vector<16x32xf32> -> vector<16x32xf32>
    %168 = arith.addf %10, %167 : vector<16x32xf32>
    %cst_48 = arith.constant dense<0.000000e+00> : vector<16xf32>
    %169 = vector.multi_reduction <add>, %168, %cst_48 [1] : vector<16x32xf32> to vector<16xf32>
    %170 = vector.shape_cast %169 : vector<16xf32> to vector<16x1xf32>
    %cst_49 = arith.constant 3.200000e+01 : f32
    %171 = vector.broadcast %cst_49 : f32 to vector<16x1xf32>
    %172 = arith.divf %170, %171 : vector<16x1xf32>
    %173 = vector.broadcast %172 : vector<16x1xf32> to vector<16x32xf32>
    %174 = arith.subf %168, %173 : vector<16x32xf32>
    %175 = arith.mulf %174, %174 : vector<16x32xf32>
    %cst_50 = arith.constant dense<0.000000e+00> : vector<16xf32>
    %176 = vector.multi_reduction <add>, %175, %cst_50 [1] : vector<16x32xf32> to vector<16xf32>
    %177 = vector.shape_cast %176 : vector<16xf32> to vector<16x1xf32>
    %cst_51 = arith.constant 3.200000e+01 : f32
    %178 = vector.broadcast %cst_51 : f32 to vector<16x1xf32>
    %179 = arith.divf %177, %178 : vector<16x1xf32>
    %180 = vector.broadcast %172 : vector<16x1xf32> to vector<16x32xf32>
    %181 = arith.subf %168, %180 : vector<16x32xf32>
    %cst_52 = arith.constant 9.99999974E-6 : f32
    %182 = vector.broadcast %cst_52 : f32 to vector<16x1xf32>
    %183 = arith.addf %179, %182 : vector<16x1xf32>
    %184 = math.rsqrt %183 : vector<16x1xf32>
    %185 = vector.broadcast %184 : vector<16x1xf32> to vector<16x32xf32>
    %186 = arith.mulf %181, %185 : vector<16x32xf32>
    %187 = vector.broadcast %3 : vector<1x32xf32> to vector<16x32xf32>
    %188 = arith.mulf %186, %187 : vector<16x32xf32>
    %c0_53 = arith.constant 0 : index
    %c0_54 = arith.constant 0 : index
    %189 = vector.load %arg5[%c0_53, %c0_54] : memref<32x128xf32, #tpu.memory_space<vmem>>, vector<32x128xf32>
    %cst_55 = arith.constant dense<0.000000e+00> : vector<16x128xf32>
    %190 = tpu.matmul %188, %189, %cst_55 {dimension_numbers = #tpu.dot_dimension_numbers<[1], [0], [0], [1], [0, 0, 1, 1], [], []>} : vector<16x32xf32>, vector<32x128xf32>, vector<16x128xf32> -> vector<16x128xf32>
    %cst_56 = arith.constant 5.000000e-01 : f32
    %191 = vector.broadcast %cst_56 : f32 to vector<16x128xf32>
    %192 = arith.mulf %191, %190 : vector<16x128xf32>
    %cst_57 = arith.constant 4.471500e-02 : f32
    %193 = vector.broadcast %cst_57 : f32 to vector<16x128xf32>
    %194 = arith.mulf %193, %190 : vector<16x128xf32>
    %195 = arith.mulf %194, %190 : vector<16x128xf32>
    %196 = arith.mulf %195, %190 : vector<16x128xf32>
    %197 = arith.addf %190, %196 : vector<16x128xf32>
    %cst_58 = arith.constant 0.797884583 : f32
    %198 = vector.broadcast %cst_58 : f32 to vector<16x128xf32>
    %199 = arith.mulf %198, %197 : vector<16x128xf32>
    %200 = math.tanh %199 : vector<16x128xf32>
    %cst_59 = arith.constant 1.000000e+00 : f32
    %201 = vector.broadcast %cst_59 : f32 to vector<16x128xf32>
    %202 = arith.addf %201, %200 : vector<16x128xf32>
    %203 = arith.mulf %192, %202 : vector<16x128xf32>
    %c0_60 = arith.constant 0 : index
    %c0_61 = arith.constant 0 : index
    %204 = vector.load %arg6[%c0_60, %c0_61] : memref<128x32xf32, #tpu.memory_space<vmem>>, vector<128x32xf32>
    %cst_62 = arith.constant dense<0.000000e+00> : vector<16x32xf32>
    %205 = tpu.matmul %203, %204, %cst_62 {dimension_numbers = #tpu.dot_dimension_numbers<[1], [0], [0], [1], [0, 0, 1, 1], [], []>} : vector<16x128xf32>, vector<128x32xf32>, vector<16x32xf32> -> vector<16x32xf32>
    %206 = arith.addf %168, %205 : vector<16x32xf32>
    %cst_63 = arith.constant dense<0.000000e+00> : vector<16xf32>
    %207 = vector.multi_reduction <add>, %206, %cst_63 [1] : vector<16x32xf32> to vector<16xf32>
    %208 = vector.shape_cast %207 : vector<16xf32> to vector<16x1xf32>
    %cst_64 = arith.constant 3.200000e+01 : f32
    %209 = vector.broadcast %cst_64 : f32 to vector<16x1xf32>
    %210 = arith.divf %208, %209 : vector<16x1xf32>
    %211 = vector.broadcast %210 : vector<16x1xf32> to vector<16x32xf32>
    %212 = arith.subf %206, %211 : vector<16x32xf32>
    %213 = arith.mulf %212, %212 : vector<16x32xf32>
    %cst_65 = arith.constant dense<0.000000e+00> : vector<16xf32>
    %214 = vector.multi_reduction <add>, %213, %cst_65 [1] : vector<16x32xf32> to vector<16xf32>
    %215 = vector.shape_cast %214 : vector<16xf32> to vector<16x1xf32>
    %cst_66 = arith.constant 3.200000e+01 : f32
    %216 = vector.broadcast %cst_66 : f32 to vector<16x1xf32>
    %217 = arith.divf %215, %216 : vector<16x1xf32>
    %218 = vector.broadcast %210 : vector<16x1xf32> to vector<16x32xf32>
    %219 = arith.subf %206, %218 : vector<16x32xf32>
    %cst_67 = arith.constant 9.99999974E-6 : f32
    %220 = vector.broadcast %cst_67 : f32 to vector<16x1xf32>
    %221 = arith.addf %217, %220 : vector<16x1xf32>
    %222 = math.rsqrt %221 : vector<16x1xf32>
    %223 = vector.broadcast %222 : vector<16x1xf32> to vector<16x32xf32>
    %224 = arith.mulf %219, %223 : vector<16x32xf32>
    %225 = vector.broadcast %4 : vector<1x32xf32> to vector<16x32xf32>
    %226 = arith.mulf %224, %225 : vector<16x32xf32>
    %cst_68 = arith.constant dense<0.000000e+00> : vector<2x32xf32>
    %227 = tpu.matmul %6, %226, %cst_68 {dimension_numbers = #tpu.dot_dimension_numbers<[1], [0], [0], [1], [0, 0, 1, 1], [], []>} : vector<2x16xf32>, vector<16x32xf32>, vector<2x32xf32> -> vector<2x32xf32>
    %c0_69 = arith.constant 0 : index
    %c0_70 = arith.constant 0 : index
    %228 = vector.load %arg7[%c0_69, %c0_70] : memref<32x128xf32, #tpu.memory_space<vmem>>, vector<32x128xf32>
    %cst_71 = arith.constant dense<0.000000e+00> : vector<2x128xf32>
    %229 = tpu.matmul %227, %228, %cst_71 {dimension_numbers = #tpu.dot_dimension_numbers<[1], [0], [0], [1], [0, 0, 1, 1], [], []>} : vector<2x32xf32>, vector<32x128xf32>, vector<2x128xf32> -> vector<2x128xf32>
    %c0_72 = arith.constant 0 : index
    %c0_73 = arith.constant 0 : index
    %230 = vector.load %arg8[%c0_72, %c0_73] : memref<2x128xf32, #tpu.memory_space<vmem>>, vector<2x128xf32>
    tpu.vector_store %arg8[%c0_72, %c0_73], %229 {strides = array<i32>} : memref<2x128xf32, #tpu.memory_space<vmem>>, vector<2x128xf32>,
    return
  }
}

</mosaic_0001>

<llo_original>
// kernel: tpu_custom_call.1
$region0: #{tpu_custom_call.1}
  #allocation0 [shape = 'u32[]', space=smem, size = 0x4, offset = 0x4, fixed_abs, tag = 'smem constant byte address 0x4 - core index']
  #allocation1 [shape = 'u32[72,128]{1,0:T(1,128)}', space=vmem, size = 0x9000, scoped, tag = 'internal scratch']
  %s0 = inlined_call_operand.hbm [shape: f32[16,16], index: 0, kind: input, shape index: {}]
  %s1 = inlined_call_operand.vmem [shape: f32[29,32], index: 1, kind: input, shape index: {}]
  %s2 = inlined_call_operand.hbm [shape: f32[16,32], index: 2, kind: input, shape index: {}]
  %s3 = inlined_call_operand.vmem [shape: f32[32,96], index: 3, kind: input, shape index: {}]
  %s4 = inlined_call_operand.vmem [shape: f32[32,32], index: 4, kind: input, shape index: {}]
  %s5 = inlined_call_operand.vmem [shape: f32[32,128], index: 5, kind: input, shape index: {}]
  %s6 = inlined_call_operand.vmem [shape: f32[128,32], index: 6, kind: input, shape index: {}]
  %s7 = inlined_call_operand.vmem [shape: f32[32,128], index: 7, kind: input, shape index: {}]
  %s8 = inlined_call_operand.hbm [shape: f32[2,128], index: 8, kind: output, shape index: {}]
  %s9 = sld [smem:[#allocation0]]
  $region50: #{tpu_custom_call.1} parent=0
    _
  %s11 = ssub.s32 1, %s9
  %s12 = scalar_select 0, %s11, %s9
  $region1: #{tpu_custom_call.1} parent=0
    #allocation2 [shape = 'u8[8192]{0}', space=vmem, size = 0x2000, scoped, tag = 'input window, operand 0, single buffered']
    #allocation3 [shape = 's32[1]{0}', space=sflag, size = 0x4, scoped, tag = 'scoped memory for tpu_custom_call.1']
    #allocation4 [shape = 's32[1]{0}', space=sflag, size = 0x4, scoped, tag = 'scoped memory for tpu_custom_call.1']
    #allocation5 [shape = 'u8[8192]{0}', space=vmem, size = 0x2000, scoped, tag = 'input window, operand 2, single buffered']
    #allocation6 [shape = 's32[1]{0}', space=sflag, size = 0x4, scoped, tag = 'scoped memory for tpu_custom_call.1']
    #allocation7 [shape = 'u8[1024]{0}', space=vmem, size = 0x400, scoped, tag = 'output window, operand 0, single buffered']
    %13 = vsyncpa [#allocation3], 0
    %14 = vsyncpa [#allocation6], 0
    %15 = vsyncpa [#allocation4], 0
    // Predicated region
    $region2: #{tpu_custom_call.1} parent=1 // pred_check
      _
    $region3: #{tpu_custom_call.1} parent=1 // pred_check_branch
      %17 = sbr.rel (0) target = $region5
    $region4: #{tpu_custom_call.1} parent=1 // pred_region
      %19 = vsyncadd [#allocation3], 0
      %s20 = sshll.u32 %s0, 4
      %s21 = int_to_ptr.hbm [resolvable:$true] %s20
      %s22 = sshll.u32 [#allocation2], 4
      %s23 = int_to_ptr.vmem [resolvable:$true] %s22
      %28 = dma.hbm_to_vmem [thread:$0]  %s21, 256, %s23, [#allocation3], 128, 128, 8
    $region5: #{tpu_custom_call.1} parent=1 // pred_fallthru
      _
    // Predicated region
    $region6: #{tpu_custom_call.1} parent=1 // pred_check
      _
    $region7: #{tpu_custom_call.1} parent=1 // pred_check_branch
      %30 = sbr.rel (0) target = $region9
    $region8: #{tpu_custom_call.1} parent=1 // pred_region
      _
    $region9: #{tpu_custom_call.1} parent=1 // pred_fallthru
      _
    // Predicated region
    $region10: #{tpu_custom_call.1} parent=1 // pred_check
      _
    $region11: #{tpu_custom_call.1} parent=1 // pred_check_branch
      %32 = sbr.rel (0) target = $region13
    $region12: #{tpu_custom_call.1} parent=1 // pred_region
      %34 = vsyncadd [#allocation6], 0
      %s35 = sshll.u32 %s2, 4
      %s36 = int_to_ptr.hbm [resolvable:$true] %s35
      %s37 = sshll.u32 [#allocation5], 4
      %s38 = int_to_ptr.vmem [resolvable:$true] %s37
      %43 = dma.hbm_to_vmem [thread:$0]  %s36, 256, %s38, [#allocation6], 128, 128, 8
    $region13: #{tpu_custom_call.1} parent=1 // pred_fallthru
      _
    // Predicated region
    $region14: #{tpu_custom_call.1} parent=1 // pred_check
      _
    $region15: #{tpu_custom_call.1} parent=1 // pred_check_branch
      %45 = sbr.rel (0) target = $region17
    $region16: #{tpu_custom_call.1} parent=1 // pred_region
      _
    $region17: #{tpu_custom_call.1} parent=1 // pred_fallthru
      _
    // Predicated region
    $region18: #{tpu_custom_call.1} parent=1 // pred_check
      _
    $region19: #{tpu_custom_call.1} parent=1 // pred_check_branch
      %47 = sbr.rel (0) target = $region21
    $region20: #{tpu_custom_call.1} parent=1 // pred_region
      _
    $region21: #{tpu_custom_call.1} parent=1 // pred_fallthru
      _
    // Predicated region
    $region22: #{tpu_custom_call.1} parent=1 // pred_check
      _
    $region23: #{tpu_custom_call.1} parent=1 // pred_check_branch
      %49 = sbr.rel (0) target = $region25
    $region24: #{tpu_custom_call.1} parent=1 // pred_region
      _
    $region25: #{tpu_custom_call.1} parent=1 // pred_fallthru
      _
    // Predicated region
    $region26: #{tpu_custom_call.1} parent=1 // pred_check
      _
    $region27: #{tpu_custom_call.1} parent=1 // pred_check_branch
      %51 = sbr.rel (0) target = $region29
    $region28: #{tpu_custom_call.1} parent=1 // pred_region
      _
    $region29: #{tpu_custom_call.1} parent=1 // pred_fallthru
      _
    // Predicated region
    $region30: #{tpu_custom_call.1} parent=1 // pred_check
      _
    $region31: #{tpu_custom_call.1} parent=1 // pred_check_branch
      %53 = sbr.rel (0) target = $region33
    $region32: #{tpu_custom_call.1} parent=1 // pred_region
      _
    $region33: #{tpu_custom_call.1} parent=1 // pred_fallthru
      _
    // Predicated region
    $region34: #{tpu_custom_call.1} parent=1 // pred_check
      _
    $region35: #{tpu_custom_call.1} parent=1 // pred_check_branch
      %55 = sbr.rel (0) target = $region37
    $region36: #{tpu_custom_call.1} parent=1 // pred_region
      %57 = dma.done [#allocation3], 256
    $region37: #{tpu_custom_call.1} parent=1 // pred_fallthru
      _
    // Predicated region
    $region38: #{tpu_custom_call.1} parent=1 // pred_check
      _
    $region39: #{tpu_custom_call.1} parent=1 // pred_check_branch
      %59 = sbr.rel (0) target = $region41
    $region40: #{tpu_custom_call.1} parent=1 // pred_region
      %61 = dma.done [#allocation6], 256
    $region41: #{tpu_custom_call.1} parent=1 // pred_fallthru
      _
    %v62 = vld [vmem:[%s1] sm:$0xff]
    %v63 = vld [vmem:[%s1 + $0x8] sm:$0xff]
    %v64 = vld [vmem:[%s1 + $0x10] sm:$0xff]
    %v65 = vld [vmem:[%s1 + $0x18] sm:$0x1f]
    %v66 = vld [vmem:[#allocation2] sm:$0xff]
    %v67 = vld [vmem:[#allocation2 + $0x8] sm:$0xff]
    %v68 = vld [vmem:[#allocation5] sm:$0xff]
    %v69 = vld [vmem:[#allocation5 + $0x8] sm:$0xff]
    %vm70 = vcmask 130048
    %v72 = vsel %vm70, %v66, 0
    %v75 = vsel %vm70, %v67, 0
    %77 = vmatpush.msra.mxu0 0.0
    %78 = vmatpush.msra.mxu0 0.0
    %79 = vmatpush.msra.mxu0 0.0
    %80 = vmatpush.msra.mxu0 0.0
    %81 = vmatpush.msra.mxu0 0.0
    %82 = vmatpush.msra.mxu0 0.0
    %83 = vmatpush.msra.mxu0 0.0
    %84 = vmatpush.msra.mxu0 0.0
    %85 = vmatpush.msra.mxu0 0.0
    %86 = vmatpush.msra.mxu0 0.0
    %87 = vmatpush.msra.mxu0 0.0
    %88 = vmatpush.msra.mxu0 0.0
    %89 = vmatpush.msra.mxu0 0.0
    %90 = vmatpush.msra.mxu0 0.0
    %91 = vmatpush.msra.mxu0 %v69
    %92 = vmatpush.msra.mxu0 %v68
    %93 = vmatmul.f32.gmra.mxu0 %v72
    %v94 = vpop.f32.mrf.mxu0
    %v95 = vadd.f32 %v62, %v94
    %96 = vmatmul.f32.gmra.mxu0 %v75
    %v97 = vpop.f32.mrf.mxu0
    %v98 = vadd.f32 %v63, %v97
    %99 = vdwg.mxu0
    %vm100 = vcmask 261120
    %v101 = vsel %vm100, %v95, 0.0
    %102 = vadd.xlane.f32.xlu0 %v101
    %v103 = vpop.xlane.xlu0 %102
    %v104 = vsel %vm100, %v98, 0.0
    %105 = vadd.xlane.f32.xlu0 %v104
    %v106 = vpop.xlane.xlu0 %105
    %v107 = vrcp.pop 32.0
    %v108 = vmul.f32 32.0, %v107
    %v109 = vsub.f32 1.0, %v108
    %v110 = vmul.f32 %v107, %v109
    %v111 = vadd.f32 %v107, %v110
    %vm112 = vweird.f32 %v107
    %v113 = vsel %vm112, %v107, %v111
    %v114 = vmul.f32 %v103, %v113
    %v115 = vmul.f32 %v106, %v113
    %v116 = vsub.f32 %v95, %v114
    %v117 = vsub.f32 %v98, %v115
    %v118 = vmul.f32 %v116, %v116
    %v119 = vmul.f32 %v117, %v117
    %v120 = vsel %vm100, %v118, 0.0
    %121 = vadd.xlane.f32.xlu0 %v120
    %v122 = vpop.xlane.xlu0 %121
    %v123 = vsel %vm100, %v119, 0.0
    %124 = vadd.xlane.f32.xlu0 %v123
    %v125 = vpop.xlane.xlu0 %124
    %v126 = vmul.f32 %v122, %v113
    %v127 = vmul.f32 %v125, %v113
    %v128 = vadd.f32 %v126, 1e-05
    %v129 = vadd.f32 %v127, 1e-05
    %v130 = vrsqrt.pop %v128
    %v131 = vmul.f32 %v130, %v128
    %v132 = vmul.f32 %v131, %v130
    %v133 = vmul.f32 0.5, %v132
    %v134 = vsub.f32 1.5, %v133
    %v135 = vmul.f32 %v130, %v134
    %vm136 = vweird.f32 %v128
    %vm137 = vweird.f32 %v130
    %vm138 = vmor %vm136, %vm137
    %v139 = vsel %vm138, %v130, %v135
    %v140 = vrsqrt.pop %v129
    %v141 = vmul.f32 %v140, %v129
    %v142 = vmul.f32 %v141, %v140
    %v143 = vmul.f32 0.5, %v142
    %v144 = vsub.f32 1.5, %v143
    %v145 = vmul.f32 %v140, %v144
    %vm146 = vweird.f32 %v129
    %vm147 = vweird.f32 %v140
    %vm148 = vmor %vm146, %vm147
    %v149 = vsel %vm148, %v140, %v145
    %v150 = vmul.f32 %v116, %v139
    %v151 = vmul.f32 %v117, %v149
    %v152 = vperm.slane %v64, 0
    %v153 = vmul.f32 %v150, %v152
    %v154 = vmul.f32 %v151, %v152
    %v155 = vld [vmem:[%s3] sm:$0xff]
    %v156 = vld [vmem:[%s3 + $0x8] sm:$0xff]
    %v157 = vld [vmem:[%s3 + $0x10] sm:$0xff]
    %v158 = vld [vmem:[%s3 + $0x18] sm:$0xff]
    %v160 = vsel %vm100, %v153, 0
    %v163 = vsel %vm100, %v154, 0
    %165 = vmatpush.msra.mxu0 0.0
    %166 = vmatpush.msra.mxu0 0.0
    %167 = vmatpush.msra.mxu0 0.0
    %168 = vmatpush.msra.mxu0 0.0
    %169 = vmatpush.msra.mxu0 0.0
    %170 = vmatpush.msra.mxu0 0.0
    %171 = vmatpush.msra.mxu0 0.0
    %172 = vmatpush.msra.mxu0 0.0
    %173 = vmatpush.msra.mxu0 0.0
    %174 = vmatpush.msra.mxu0 0.0
    %175 = vmatpush.msra.mxu0 0.0
    %176 = vmatpush.msra.mxu0 0.0
    %177 = vmatpush.msra.mxu0 %v158
    %178 = vmatpush.msra.mxu0 %v157
    %179 = vmatpush.msra.mxu0 %v156
    %180 = vmatpush.msra.mxu0 %v155
    %181 = vmatmul.f32.gmra.mxu0 %v160
    %v182 = vpop.f32.mrf.mxu0
    %v183 = vadd.f32 0.0, %v182
    %184 = vmatmul.f32.gmra.mxu0 %v163
    %v185 = vpop.f32.mrf.mxu0
    %v186 = vadd.f32 0.0, %v185
    %187 = vdwg.mxu0
    %189 = vrot.lane.b32.xlu0 %v183, 96
    %v190 = vpop.permute.xlu0 %189
    %vm193 = vcmask 1044480
    %v194 = vrot.slane %v64, 3
    %v195 = vrot.slane %v65, 3
    %v196 = vsel %vm193, %v194, %v195
    %vm198 = vcmask 64512
    %v199 = vsel %vm198, %v183, 0
    %v201 = vsel %vm198, %v190, 0
    %203 = vmatpush.xpose.msra.mxu0 0.0
    %204 = vmatpush.xpose.msra.mxu0 0.0
    %205 = vmatpush.xpose.msra.mxu0 0.0
    %206 = vmatpush.xpose.msra.mxu0 0.0
    %207 = vmatpush.xpose.msra.mxu0 0.0
    %208 = vmatpush.xpose.msra.mxu0 0.0
    %209 = vmatpush.xpose.msra.mxu0 0.0
    %210 = vmatpush.xpose.msra.mxu0 0.0
    %211 = vmatpush.xpose.msra.mxu0 0.0
    %212 = vmatpush.xpose.msra.mxu0 0.0
    %213 = vmatpush.xpose.msra.mxu0 0.0
    %214 = vmatpush.xpose.msra.mxu0 0.0
    %215 = vmatpush.xpose.msra.mxu0 0.0
    %216 = vmatpush.xpose.msra.mxu0 0.0
    %217 = vmatpush.xpose.msra.mxu0 0.0
    %218 = vmatpush.xpose.msra.mxu0 %v201
    %219 = vmatmul.f32.gmra.mxu0 %v199
    %v220 = vpop.f32.mrf.mxu0
    %v221 = vadd.f32 %v196, %v220
    %222 = vdwg.mxu0
    %v223 = vsel %vm198, %v221, -inf
    %224 = vmax.xlane.f32.xlu0 %v223
    %v225 = vpop.xlane.xlu0 %224
    %v226 = vsub.f32 %v221, %v225
    %v227 = vmul.f32 %v226, 1.442695
    %v228 = vpow.pop %v227
    %v229 = vsel %vm198, %v228, 0.0
    %230 = vadd.xlane.f32.xlu0 %v229
    %v231 = vpop.xlane.xlu0 %230
    %v232 = vrcp.pop %v231
    %v233 = vmul.f32 %v231, %v232
    %v234 = vsub.f32 1.0, %v233
    %v235 = vmul.f32 %v232, %v234
    %v236 = vadd.f32 %v232, %v235
    %vm237 = vweird.f32 %v231
    %vm238 = vweird.f32 %v232
    %vm239 = vmor %vm237, %vm238
    %v240 = vsel %vm239, %v232, %v236
    %v241 = vand.u32 2147483647, %v231
    %vm242 = vcmp.eq.f32.partialorder %v241, 8.507059e+37
    %v243 = vand.u32 %v231, 2147483648
    %v244 = vor.u32 1.1754944e-38, %v243
    %v245 = vsel %vm242, %v244, %v240
    %246 = vrot.lane.b32.xlu0 %v183, 64
    %v247 = vpop.permute.xlu0 %246
    %v250 = vsel %vm198, %v228, 0
    %252 = vmatpush.msra.mxu0 0.0
    %253 = vmatpush.msra.mxu0 0.0
    %254 = vmatpush.msra.mxu0 0.0
    %255 = vmatpush.msra.mxu0 0.0
    %256 = vmatpush.msra.mxu0 0.0
    %257 = vmatpush.msra.mxu0 0.0
    %258 = vmatpush.msra.mxu0 0.0
    %259 = vmatpush.msra.mxu0 0.0
    %260 = vmatpush.msra.mxu0 0.0
    %261 = vmatpush.msra.mxu0 0.0
    %262 = vmatpush.msra.mxu0 0.0
    %263 = vmatpush.msra.mxu0 0.0
    %264 = vmatpush.msra.mxu0 0.0
    %265 = vmatpush.msra.mxu0 0.0
    %266 = vmatpush.msra.mxu0 0.0
    %267 = vmatpush.msra.mxu0 %v247
    %268 = vmatmul.f32.gmra.mxu0 %v250
    %v269 = vpop.f32.mrf.mxu0
    %v270 = vadd.f32 0.0, %v269
    %271 = vdwg.mxu0
    %v272 = vmul.f32 %v270, %v245
    %273 = vrot.lane.b32.xlu0 %v183, 120
    %v274 = vpop.permute.xlu0 %273
    %275 = vrot.lane.b32.xlu0 %v183, 88
    %v276 = vpop.permute.xlu0 %275
    %v277 = vsel %vm198, %v274, 0
    %v279 = vsel %vm198, %v276, 0
    %281 = vmatpush.xpose.msra.mxu0 0.0
    %282 = vmatpush.xpose.msra.mxu0 0.0
    %283 = vmatpush.xpose.msra.mxu0 0.0
    %284 = vmatpush.xpose.msra.mxu0 0.0
    %285 = vmatpush.xpose.msra.mxu0 0.0
    %286 = vmatpush.xpose.msra.mxu0 0.0
    %287 = vmatpush.xpose.msra.mxu0 0.0
    %288 = vmatpush.xpose.msra.mxu0 0.0
    %289 = vmatpush.xpose.msra.mxu0 0.0
    %290 = vmatpush.xpose.msra.mxu0 0.0
    %291 = vmatpush.xpose.msra.mxu0 0.0
    %292 = vmatpush.xpose.msra.mxu0 0.0
    %293 = vmatpush.xpose.msra.mxu0 0.0
    %294 = vmatpush.xpose.msra.mxu0 0.0
    %295 = vmatpush.xpose.msra.mxu0 0.0
    %296 = vmatpush.xpose.msra.mxu0 %v279
    %297 = vmatmul.f32.gmra.mxu0 %v277
    %v298 = vpop.f32.mrf.mxu0
    %v299 = vadd.f32 %v196, %v298
    %300 = vdwg.mxu0
    %v301 = vsel %vm198, %v299, -inf
    %302 = vmax.xlane.f32.xlu0 %v301
    %v303 = vpop.xlane.xlu0 %302
    %v304 = vsub.f32 %v299, %v303
    %v305 = vmul.f32 %v304, 1.442695
    %v306 = vpow.pop %v305
    %v307 = vsel %vm198, %v306, 0.0
    %308 = vadd.xlane.f32.xlu0 %v307
    %v309 = vpop.xlane.xlu0 %308
    %v310 = vrcp.pop %v309
    %v311 = vmul.f32 %v309, %v310
    %v312 = vsub.f32 1.0, %v311
    %v313 = vmul.f32 %v310, %v312
    %v314 = vadd.f32 %v310, %v313
    %vm315 = vweird.f32 %v309
    %vm316 = vweird.f32 %v310
    %vm317 = vmor %vm315, %vm316
    %v318 = vsel %vm317, %v310, %v314
    %v319 = vand.u32 2147483647, %v309
    %vm320 = vcmp.eq.f32.partialorder %v319, 8.507059e+37
    %v321 = vand.u32 %v309, 2147483648
    %v322 = vor.u32 1.1754944e-38, %v321
    %v323 = vsel %vm320, %v322, %v318
    %324 = vrot.lane.b32.xlu0 %v183, 56
    %v325 = vpop.permute.xlu0 %324
    %v328 = vsel %vm198, %v306, 0
    %330 = vmatpush.msra.mxu0 0.0
    %331 = vmatpush.msra.mxu0 0.0
    %332 = vmatpush.msra.mxu0 0.0
    %333 = vmatpush.msra.mxu0 0.0
    %334 = vmatpush.msra.mxu0 0.0
    %335 = vmatpush.msra.mxu0 0.0
    %336 = vmatpush.msra.mxu0 0.0
    %337 = vmatpush.msra.mxu0 0.0
    %338 = vmatpush.msra.mxu0 0.0
    %339 = vmatpush.msra.mxu0 0.0
    %340 = vmatpush.msra.mxu0 0.0
    %341 = vmatpush.msra.mxu0 0.0
    %342 = vmatpush.msra.mxu0 0.0
    %343 = vmatpush.msra.mxu0 0.0
    %344 = vmatpush.msra.mxu0 0.0
    %345 = vmatpush.msra.mxu0 %v325
    %346 = vmatmul.f32.gmra.mxu0 %v328
    %v347 = vpop.f32.mrf.mxu0
    %v348 = vadd.f32 0.0, %v347
    %349 = vdwg.mxu0
    %v350 = vmul.f32 %v348, %v323
    %351 = vrot.lane.b32.xlu0 %v183, 112
    %v352 = vpop.permute.xlu0 %351
    %353 = vrot.lane.b32.xlu0 %v183, 80
    %v354 = vpop.permute.xlu0 %353
    %v355 = vsel %vm198, %v352, 0
    %v357 = vsel %vm198, %v354, 0
    %359 = vmatpush.xpose.msra.mxu0 0.0
    %360 = vmatpush.xpose.msra.mxu0 0.0
    %361 = vmatpush.xpose.msra.mxu0 0.0
    %362 = vmatpush.xpose.msra.mxu0 0.0
    %363 = vmatpush.xpose.msra.mxu0 0.0
    %364 = vmatpush.xpose.msra.mxu0 0.0
    %365 = vmatpush.xpose.msra.mxu0 0.0
    %366 = vmatpush.xpose.msra.mxu0 0.0
    %367 = vmatpush.xpose.msra.mxu0 0.0
    %368 = vmatpush.xpose.msra.mxu0 0.0
    %369 = vmatpush.xpose.msra.mxu0 0.0
    %370 = vmatpush.xpose.msra.mxu0 0.0
    %371 = vmatpush.xpose.msra.mxu0 0.0
    %372 = vmatpush.xpose.msra.mxu0 0.0
    %373 = vmatpush.xpose.msra.mxu0 0.0
    %374 = vmatpush.xpose.msra.mxu0 %v357
    %375 = vmatmul.f32.gmra.mxu0 %v355
    %v376 = vpop.f32.mrf.mxu0
    %v377 = vadd.f32 %v196, %v376
    %378 = vdwg.mxu0
    %v379 = vsel %vm198, %v377, -inf
    %380 = vmax.xlane.f32.xlu0 %v379
    %v381 = vpop.xlane.xlu0 %380
    %v382 = vsub.f32 %v377, %v381
    %v383 = vmul.f32 %v382, 1.442695
    %v384 = vpow.pop %v383
    %v385 = vsel %vm198, %v384, 0.0
    %386 = vadd.xlane.f32.xlu0 %v385
    %v387 = vpop.xlane.xlu0 %386
    %v388 = vrcp.pop %v387
    %v389 = vmul.f32 %v387, %v388
    %v390 = vsub.f32 1.0, %v389
    %v391 = vmul.f32 %v388, %v390
    %v392 = vadd.f32 %v388, %v391
    %vm393 = vweird.f32 %v387
    %vm394 = vweird.f32 %v388
    %vm395 = vmor %vm393, %vm394
    %v396 = vsel %vm395, %v388, %v392
    %v397 = vand.u32 2147483647, %v387
    %vm398 = vcmp.eq.f32.partialorder %v397, 8.507059e+37
    %v399 = vand.u32 %v387, 2147483648
    %v400 = vor.u32 1.1754944e-38, %v399
    %v401 = vsel %vm398, %v400, %v396
    %402 = vrot.lane.b32.xlu0 %v183, 48
    %v403 = vpop.permute.xlu0 %402
    %v406 = vsel %vm198, %v384, 0
    %408 = vmatpush.msra.mxu0 0.0
    %409 = vmatpush.msra.mxu0 0.0
    %410 = vmatpush.msra.mxu0 0.0
    %411 = vmatpush.msra.mxu0 0.0
    %412 = vmatpush.msra.mxu0 0.0
    %413 = vmatpush.msra.mxu0 0.0
    %414 = vmatpush.msra.mxu0 0.0
    %415 = vmatpush.msra.mxu0 0.0
    %416 = vmatpush.msra.mxu0 0.0
    %417 = vmatpush.msra.mxu0 0.0
    %418 = vmatpush.msra.mxu0 0.0
    %419 = vmatpush.msra.mxu0 0.0
    %420 = vmatpush.msra.mxu0 0.0
    %421 = vmatpush.msra.mxu0 0.0
    %422 = vmatpush.msra.mxu0 0.0
    %423 = vmatpush.msra.mxu0 %v403
    %424 = vmatmul.f32.gmra.mxu0 %v406
    %v425 = vpop.f32.mrf.mxu0
    %v426 = vadd.f32 0.0, %v425
    %427 = vdwg.mxu0
    %v428 = vmul.f32 %v426, %v401
    %429 = vrot.lane.b32.xlu0 %v183, 104
    %v430 = vpop.permute.xlu0 %429
    %431 = vrot.lane.b32.xlu0 %v183, 72
    %v432 = vpop.permute.xlu0 %431
    %v433 = vsel %vm198, %v430, 0
    %v435 = vsel %vm198, %v432, 0
    %437 = vmatpush.xpose.msra.mxu0 0.0
    %438 = vmatpush.xpose.msra.mxu0 0.0
    %439 = vmatpush.xpose.msra.mxu0 0.0
    %440 = vmatpush.xpose.msra.mxu0 0.0
    %441 = vmatpush.xpose.msra.mxu0 0.0
    %442 = vmatpush.xpose.msra.mxu0 0.0
    %443 = vmatpush.xpose.msra.mxu0 0.0
    %444 = vmatpush.xpose.msra.mxu0 0.0
    %445 = vmatpush.xpose.msra.mxu0 0.0
    %446 = vmatpush.xpose.msra.mxu0 0.0
    %447 = vmatpush.xpose.msra.mxu0 0.0
    %448 = vmatpush.xpose.msra.mxu0 0.0
    %449 = vmatpush.xpose.msra.mxu0 0.0
    %450 = vmatpush.xpose.msra.mxu0 0.0
    %451 = vmatpush.xpose.msra.mxu0 0.0
    %452 = vmatpush.xpose.msra.mxu0 %v435
    %453 = vmatmul.f32.gmra.mxu0 %v433
    %v454 = vpop.f32.mrf.mxu0
    %v455 = vadd.f32 %v196, %v454
    %456 = vdwg.mxu0
    %v457 = vsel %vm198, %v455, -inf
    %458 = vmax.xlane.f32.xlu0 %v457
    %v459 = vpop.xlane.xlu0 %458
    %v460 = vsub.f32 %v455, %v459
    %v461 = vmul.f32 %v460, 1.442695
    %v462 = vpow.pop %v461
    %v463 = vsel %vm198, %v462, 0.0
    %464 = vadd.xlane.f32.xlu0 %v463
    %v465 = vpop.xlane.xlu0 %464
    %v466 = vrcp.pop %v465
    %v467 = vmul.f32 %v465, %v466
    %v468 = vsub.f32 1.0, %v467
    %v469 = vmul.f32 %v466, %v468
    %v470 = vadd.f32 %v466, %v469
    %vm471 = vweird.f32 %v465
    %vm472 = vweird.f32 %v466
    %vm473 = vmor %vm471, %vm472
    %v474 = vsel %vm473, %v466, %v470
    %v475 = vand.u32 2147483647, %v465
    %vm476 = vcmp.eq.f32.partialorder %v475, 8.507059e+37
    %v477 = vand.u32 %v465, 2147483648
    %v478 = vor.u32 1.1754944e-38, %v477
    %v479 = vsel %vm476, %v478, %v474
    %480 = vrot.lane.b32.xlu0 %v183, 40
    %v481 = vpop.permute.xlu0 %480
    %v484 = vsel %vm198, %v462, 0
    %486 = vmatpush.msra.mxu0 0.0
    %487 = vmatpush.msra.mxu0 0.0
    %488 = vmatpush.msra.mxu0 0.0
    %489 = vmatpush.msra.mxu0 0.0
    %490 = vmatpush.msra.mxu0 0.0
    %491 = vmatpush.msra.mxu0 0.0
    %492 = vmatpush.msra.mxu0 0.0
    %493 = vmatpush.msra.mxu0 0.0
    %494 = vmatpush.msra.mxu0 0.0
    %495 = vmatpush.msra.mxu0 0.0
    %496 = vmatpush.msra.mxu0 0.0
    %497 = vmatpush.msra.mxu0 0.0
    %498 = vmatpush.msra.mxu0 0.0
    %499 = vmatpush.msra.mxu0 0.0
    %500 = vmatpush.msra.mxu0 0.0
    %501 = vmatpush.msra.mxu0 %v481
    %502 = vmatmul.f32.gmra.mxu0 %v484
    %v503 = vpop.f32.mrf.mxu0
    %v504 = vadd.f32 0.0, %v503
    %505 = vdwg.mxu0
    %v506 = vmul.f32 %v504, %v479
    %508 = vrot.lane.b32.xlu0 %v350, 8
    %v509 = vpop.permute.xlu0 %508
    %512 = vrot.lane.b32.xlu0 %v428, 16
    %v513 = vpop.permute.xlu0 %512
    %516 = vrot.lane.b32.xlu0 %v506, 24
    %v517 = vpop.permute.xlu0 %516
    %v519 = vsel %vm198, %v272, %v509
    %v520 = vsel %vm70, %v519, %v513
    %vm521 = vcmask 195584
    %v522 = vsel %vm521, %v520, %v517
    %524 = vrot.lane.b32.xlu0 %v186, 96
    %v525 = vpop.permute.xlu0 %524
    %v526 = vsel %vm198, %v186, 0
    %v528 = vsel %vm198, %v525, 0
    %530 = vmatpush.xpose.msra.mxu0 0.0
    %531 = vmatpush.xpose.msra.mxu0 0.0
    %532 = vmatpush.xpose.msra.mxu0 0.0
    %533 = vmatpush.xpose.msra.mxu0 0.0
    %534 = vmatpush.xpose.msra.mxu0 0.0
    %535 = vmatpush.xpose.msra.mxu0 0.0
    %536 = vmatpush.xpose.msra.mxu0 0.0
    %537 = vmatpush.xpose.msra.mxu0 0.0
    %538 = vmatpush.xpose.msra.mxu0 0.0
    %539 = vmatpush.xpose.msra.mxu0 0.0
    %540 = vmatpush.xpose.msra.mxu0 0.0
    %541 = vmatpush.xpose.msra.mxu0 0.0
    %542 = vmatpush.xpose.msra.mxu0 0.0
    %543 = vmatpush.xpose.msra.mxu0 0.0
    %544 = vmatpush.xpose.msra.mxu0 0.0
    %545 = vmatpush.xpose.msra.mxu0 %v528
    %546 = vmatmul.f32.gmra.mxu0 %v526
    %v547 = vpop.f32.mrf.mxu0
    %v548 = vadd.f32 %v196, %v547
    %549 = vdwg.mxu0
    %v550 = vsel %vm198, %v548, -inf
    %551 = vmax.xlane.f32.xlu0 %v550
    %v552 = vpop.xlane.xlu0 %551
    %v553 = vsub.f32 %v548, %v552
    %v554 = vmul.f32 %v553, 1.442695
    %v555 = vpow.pop %v554
    %v556 = vsel %vm198, %v555, 0.0
    %557 = vadd.xlane.f32.xlu0 %v556
    %v558 = vpop.xlane.xlu0 %557
    %v559 = vrcp.pop %v558
    %v560 = vmul.f32 %v558, %v559
    %v561 = vsub.f32 1.0, %v560
    %v562 = vmul.f32 %v559, %v561
    %v563 = vadd.f32 %v559, %v562
    %vm564 = vweird.f32 %v558
    %vm565 = vweird.f32 %v559
    %vm566 = vmor %vm564, %vm565
    %v567 = vsel %vm566, %v559, %v563
    %v568 = vand.u32 2147483647, %v558
    %vm569 = vcmp.eq.f32.partialorder %v568, 8.507059e+37
    %v570 = vand.u32 %v558, 2147483648
    %v571 = vor.u32 1.1754944e-38, %v570
    %v572 = vsel %vm569, %v571, %v567
    %573 = vrot.lane.b32.xlu0 %v186, 64
    %v574 = vpop.permute.xlu0 %573
    %v577 = vsel %vm198, %v555, 0
    %579 = vmatpush.msra.mxu0 0.0
    %580 = vmatpush.msra.mxu0 0.0
    %581 = vmatpush.msra.mxu0 0.0
    %582 = vmatpush.msra.mxu0 0.0
    %583 = vmatpush.msra.mxu0 0.0
    %584 = vmatpush.msra.mxu0 0.0
    %585 = vmatpush.msra.mxu0 0.0
    %586 = vmatpush.msra.mxu0 0.0
    %587 = vmatpush.msra.mxu0 0.0
    %588 = vmatpush.msra.mxu0 0.0
    %589 = vmatpush.msra.mxu0 0.0
    %590 = vmatpush.msra.mxu0 0.0
    %591 = vmatpush.msra.mxu0 0.0
    %592 = vmatpush.msra.mxu0 0.0
    %593 = vmatpush.msra.mxu0 0.0
    %594 = vmatpush.msra.mxu0 %v574
    %595 = vmatmul.f32.gmra.mxu0 %v577
    %v596 = vpop.f32.mrf.mxu0
    %v597 = vadd.f32 0.0, %v596
    %598 = vdwg.mxu0
    %v599 = vmul.f32 %v597, %v572
    %600 = vrot.lane.b32.xlu0 %v186, 120
    %v601 = vpop.permute.xlu0 %600
    %602 = vrot.lane.b32.xlu0 %v186, 88
    %v603 = vpop.permute.xlu0 %602
    %v604 = vsel %vm198, %v601, 0
    %v606 = vsel %vm198, %v603, 0
    %608 = vmatpush.xpose.msra.mxu0 0.0
    %609 = vmatpush.xpose.msra.mxu0 0.0
    %610 = vmatpush.xpose.msra.mxu0 0.0
    %611 = vmatpush.xpose.msra.mxu0 0.0
    %612 = vmatpush.xpose.msra.mxu0 0.0
    %613 = vmatpush.xpose.msra.mxu0 0.0
    %614 = vmatpush.xpose.msra.mxu0 0.0
    %615 = vmatpush.xpose.msra.mxu0 0.0
    %616 = vmatpush.xpose.msra.mxu0 0.0
    %617 = vmatpush.xpose.msra.mxu0 0.0
    %618 = vmatpush.xpose.msra.mxu0 0.0
    %619 = vmatpush.xpose.msra.mxu0 0.0
    %620 = vmatpush.xpose.msra.mxu0 0.0
    %621 = vmatpush.xpose.msra.mxu0 0.0
    %622 = vmatpush.xpose.msra.mxu0 0.0
    %623 = vmatpush.xpose.msra.mxu0 %v606
    %624 = vmatmul.f32.gmra.mxu0 %v604
    %v625 = vpop.f32.mrf.mxu0
    %v626 = vadd.f32 %v196, %v625
    %627 = vdwg.mxu0
    %v628 = vsel %vm198, %v626, -inf
    %629 = vmax.xlane.f32.xlu0 %v628
    %v630 = vpop.xlane.xlu0 %629
    %v631 = vsub.f32 %v626, %v630
    %v632 = vmul.f32 %v631, 1.442695
    %v633 = vpow.pop %v632
    %v634 = vsel %vm198, %v633, 0.0
    %635 = vadd.xlane.f32.xlu0 %v634
    %v636 = vpop.xlane.xlu0 %635
    %v637 = vrcp.pop %v636
    %v638 = vmul.f32 %v636, %v637
    %v639 = vsub.f32 1.0, %v638
    %v640 = vmul.f32 %v637, %v639
    %v641 = vadd.f32 %v637, %v640
    %vm642 = vweird.f32 %v636
    %vm643 = vweird.f32 %v637
    %vm644 = vmor %vm642, %vm643
    %v645 = vsel %vm644, %v637, %v641
    %v646 = vand.u32 2147483647, %v636
    %vm647 = vcmp.eq.f32.partialorder %v646, 8.507059e+37
    %v648 = vand.u32 %v636, 2147483648
    %v649 = vor.u32 1.1754944e-38, %v648
    %v650 = vsel %vm647, %v649, %v645
    %651 = vrot.lane.b32.xlu0 %v186, 56
    %v652 = vpop.permute.xlu0 %651
    %v655 = vsel %vm198, %v633, 0
    %657 = vmatpush.msra.mxu0 0.0
    %658 = vmatpush.msra.mxu0 0.0
    %659 = vmatpush.msra.mxu0 0.0
    %660 = vmatpush.msra.mxu0 0.0
    %661 = vmatpush.msra.mxu0 0.0
    %662 = vmatpush.msra.mxu0 0.0
    %663 = vmatpush.msra.mxu0 0.0
    %664 = vmatpush.msra.mxu0 0.0
    %665 = vmatpush.msra.mxu0 0.0
    %666 = vmatpush.msra.mxu0 0.0
    %667 = vmatpush.msra.mxu0 0.0
    %668 = vmatpush.msra.mxu0 0.0
    %669 = vmatpush.msra.mxu0 0.0
    %670 = vmatpush.msra.mxu0 0.0
    %671 = vmatpush.msra.mxu0 0.0
    %672 = vmatpush.msra.mxu0 %v652
    %673 = vmatmul.f32.gmra.mxu0 %v655
    %v674 = vpop.f32.mrf.mxu0
    %v675 = vadd.f32 0.0, %v674
    %676 = vdwg.mxu0
    %v677 = vmul.f32 %v675, %v650
    %678 = vrot.lane.b32.xlu0 %v186, 112
    %v679 = vpop.permute.xlu0 %678
    %680 = vrot.lane.b32.xlu0 %v186, 80
    %v681 = vpop.permute.xlu0 %680
    %v682 = vsel %vm198, %v679, 0
    %v684 = vsel %vm198, %v681, 0
    %686 = vmatpush.xpose.msra.mxu0 0.0
    %687 = vmatpush.xpose.msra.mxu0 0.0
    %688 = vmatpush.xpose.msra.mxu0 0.0
    %689 = vmatpush.xpose.msra.mxu0 0.0
    %690 = vmatpush.xpose.msra.mxu0 0.0
    %691 = vmatpush.xpose.msra.mxu0 0.0
    %692 = vmatpush.xpose.msra.mxu0 0.0
    %693 = vmatpush.xpose.msra.mxu0 0.0
    %694 = vmatpush.xpose.msra.mxu0 0.0
    %695 = vmatpush.xpose.msra.mxu0 0.0
    %696 = vmatpush.xpose.msra.mxu0 0.0
    %697 = vmatpush.xpose.msra.mxu0 0.0
    %698 = vmatpush.xpose.msra.mxu0 0.0
    %699 = vmatpush.xpose.msra.mxu0 0.0
    %700 = vmatpush.xpose.msra.mxu0 0.0
    %701 = vmatpush.xpose.msra.mxu0 %v684
    %702 = vmatmul.f32.gmra.mxu0 %v682
    %v703 = vpop.f32.mrf.mxu0
    %v704 = vadd.f32 %v196, %v703
    %705 = vdwg.mxu0
    %v706 = vsel %vm198, %v704, -inf
    %707 = vmax.xlane.f32.xlu0 %v706
    %v708 = vpop.xlane.xlu0 %707
    %v709 = vsub.f32 %v704, %v708
    %v710 = vmul.f32 %v709, 1.442695
    %v711 = vpow.pop %v710
    %v712 = vsel %vm198, %v711, 0.0
    %713 = vadd.xlane.f32.xlu0 %v712
    %v714 = vpop.xlane.xlu0 %713
    %v715 = vrcp.pop %v714
    %v716 = vmul.f32 %v714, %v715
    %v717 = vsub.f32 1.0, %v716
    %v718 = vmul.f32 %v715, %v717
    %v719 = vadd.f32 %v715, %v718
    %vm720 = vweird.f32 %v714
    %vm721 = vweird.f32 %v715
    %vm722 = vmor %vm720, %vm721
    %v723 = vsel %vm722, %v715, %v719
    %v724 = vand.u32 2147483647, %v714
    %vm725 = vcmp.eq.f32.partialorder %v724, 8.507059e+37
    %v726 = vand.u32 %v714, 2147483648
    %v727 = vor.u32 1.1754944e-38, %v726
    %v728 = vsel %vm725, %v727, %v723
    %729 = vrot.lane.b32.xlu0 %v186, 48
    %v730 = vpop.permute.xlu0 %729
    %v733 = vsel %vm198, %v711, 0
    %735 = vmatpush.msra.mxu0 0.0
    %736 = vmatpush.msra.mxu0 0.0
    %737 = vmatpush.msra.mxu0 0.0
    %738 = vmatpush.msra.mxu0 0.0
    %739 = vmatpush.msra.mxu0 0.0
    %740 = vmatpush.msra.mxu0 0.0
    %741 = vmatpush.msra.mxu0 0.0
    %742 = vmatpush.msra.mxu0 0.0
    %743 = vmatpush.msra.mxu0 0.0
    %744 = vmatpush.msra.mxu0 0.0
    %745 = vmatpush.msra.mxu0 0.0
    %746 = vmatpush.msra.mxu0 0.0
    %747 = vmatpush.msra.mxu0 0.0
    %748 = vmatpush.msra.mxu0 0.0
    %749 = vmatpush.msra.mxu0 0.0
    %750 = vmatpush.msra.mxu0 %v730
    %751 = vmatmul.f32.gmra.mxu0 %v733
    %v752 = vpop.f32.mrf.mxu0
    %v753 = vadd.f32 0.0, %v752
    %754 = vdwg.mxu0
    %v755 = vmul.f32 %v753, %v728
    %756 = vrot.lane.b32.xlu0 %v186, 104
    %v757 = vpop.permute.xlu0 %756
    %758 = vrot.lane.b32.xlu0 %v186, 72
    %v759 = vpop.permute.xlu0 %758
    %v760 = vsel %vm198, %v757, 0
    %v762 = vsel %vm198, %v759, 0
    %764 = vmatpush.xpose.msra.mxu0 0.0
    %765 = vmatpush.xpose.msra.mxu0 0.0
    %766 = vmatpush.xpose.msra.mxu0 0.0
    %767 = vmatpush.xpose.msra.mxu0 0.0
    %768 = vmatpush.xpose.msra.mxu0 0.0
    %769 = vmatpush.xpose.msra.mxu0 0.0
    %770 = vmatpush.xpose.msra.mxu0 0.0
    %771 = vmatpush.xpose.msra.mxu0 0.0
    %772 = vmatpush.xpose.msra.mxu0 0.0
    %773 = vmatpush.xpose.msra.mxu0 0.0
    %774 = vmatpush.xpose.msra.mxu0 0.0
    %775 = vmatpush.xpose.msra.mxu0 0.0
    %776 = vmatpush.xpose.msra.mxu0 0.0
    %777 = vmatpush.xpose.msra.mxu0 0.0
    %778 = vmatpush.xpose.msra.mxu0 0.0
    %779 = vmatpush.xpose.msra.mxu0 %v762
    %780 = vmatmul.f32.gmra.mxu0 %v760
    %v781 = vpop.f32.mrf.mxu0
    %v782 = vadd.f32 %v196, %v781
    %783 = vdwg.mxu0
    %v784 = vsel %vm198, %v782, -inf
    %785 = vmax.xlane.f32.xlu0 %v784
    %v786 = vpop.xlane.xlu0 %785
    %v787 = vsub.f32 %v782, %v786
    %v788 = vmul.f32 %v787, 1.442695
    %v789 = vpow.pop %v788
    %v790 = vsel %vm198, %v789, 0.0
    %791 = vadd.xlane.f32.xlu0 %v790
    %v792 = vpop.xlane.xlu0 %791
    %v793 = vrcp.pop %v792
    %v794 = vmul.f32 %v792, %v793
    %v795 = vsub.f32 1.0, %v794
    %v796 = vmul.f32 %v793, %v795
    %v797 = vadd.f32 %v793, %v796
    %vm798 = vweird.f32 %v792
    %vm799 = vweird.f32 %v793
    %vm800 = vmor %vm798, %vm799
    %v801 = vsel %vm800, %v793, %v797
    %v802 = vand.u32 2147483647, %v792
    %vm803 = vcmp.eq.f32.partialorder %v802, 8.507059e+37
    %v804 = vand.u32 %v792, 2147483648
    %v805 = vor.u32 1.1754944e-38, %v804
    %v806 = vsel %vm803, %v805, %v801
    %807 = vrot.lane.b32.xlu0 %v186, 40
    %v808 = vpop.permute.xlu0 %807
    %v811 = vsel %vm198, %v789, 0
    %813 = vmatpush.msra.mxu0 0.0
    %814 = vmatpush.msra.mxu0 0.0
    %815 = vmatpush.msra.mxu0 0.0
    %816 = vmatpush.msra.mxu0 0.0
    %817 = vmatpush.msra.mxu0 0.0
    %818 = vmatpush.msra.mxu0 0.0
    %819 = vmatpush.msra.mxu0 0.0
    %820 = vmatpush.msra.mxu0 0.0
    %821 = vmatpush.msra.mxu0 0.0
    %822 = vmatpush.msra.mxu0 0.0
    %823 = vmatpush.msra.mxu0 0.0
    %824 = vmatpush.msra.mxu0 0.0
    %825 = vmatpush.msra.mxu0 0.0
    %826 = vmatpush.msra.mxu0 0.0
    %827 = vmatpush.msra.mxu0 0.0
    %828 = vmatpush.msra.mxu0 %v808
    %829 = vmatmul.f32.gmra.mxu0 %v811
    %v830 = vpop.f32.mrf.mxu0
    %v831 = vadd.f32 0.0, %v830
    %832 = vdwg.mxu0
    %v833 = vmul.f32 %v831, %v806
    %835 = vrot.lane.b32.xlu0 %v677, 8
    %v836 = vpop.permute.xlu0 %835
    %839 = vrot.lane.b32.xlu0 %v755, 16
    %v840 = vpop.permute.xlu0 %839
    %843 = vrot.lane.b32.xlu0 %v833, 24
    %v844 = vpop.permute.xlu0 %843
    %v846 = vsel %vm198, %v599, %v836
    %v847 = vsel %vm70, %v846, %v840
    %v848 = vsel %vm521, %v847, %v844
    %v849 = vld [vmem:[%s4] sm:$0xff]
    %v850 = vld [vmem:[%s4 + $0x8] sm:$0xff]
    %v851 = vld [vmem:[%s4 + $0x10] sm:$0xff]
    %v852 = vld [vmem:[%s4 + $0x18] sm:$0xff]
    %v854 = vsel %vm100, %v522, 0
    %v857 = vsel %vm100, %v848, 0
    %859 = vmatpush.msra.mxu0 0.0
    %860 = vmatpush.msra.mxu0 0.0
    %861 = vmatpush.msra.mxu0 0.0
    %862 = vmatpush.msra.mxu0 0.0
    %863 = vmatpush.msra.mxu0 0.0
    %864 = vmatpush.msra.mxu0 0.0
    %865 = vmatpush.msra.mxu0 0.0
    %866 = vmatpush.msra.mxu0 0.0
    %867 = vmatpush.msra.mxu0 0.0
    %868 = vmatpush.msra.mxu0 0.0
    %869 = vmatpush.msra.mxu0 0.0
    %870 = vmatpush.msra.mxu0 0.0
    %871 = vmatpush.msra.mxu0 %v852
    %872 = vmatpush.msra.mxu0 %v851
    %873 = vmatpush.msra.mxu0 %v850
    %874 = vmatpush.msra.mxu0 %v849
    %875 = vmatmul.f32.gmra.mxu0 %v854
    %v876 = vpop.f32.mrf.mxu0
    %v877 = vadd.f32 0.0, %v876
    %878 = vmatmul.f32.gmra.mxu0 %v857
    %v879 = vpop.f32.mrf.mxu0
    %v880 = vadd.f32 0.0, %v879
    %881 = vdwg.mxu0
    %v882 = vadd.f32 %v95, %v877
    %v883 = vadd.f32 %v98, %v880
    %v884 = vsel %vm100, %v882, 0.0
    %885 = vadd.xlane.f32.xlu0 %v884
    %v886 = vpop.xlane.xlu0 %885
    %v887 = vsel %vm100, %v883, 0.0
    %888 = vadd.xlane.f32.xlu0 %v887
    %v889 = vpop.xlane.xlu0 %888
    %v890 = vmul.f32 %v886, %v113
    %v891 = vmul.f32 %v889, %v113
    %v892 = vsub.f32 %v882, %v890
    %v893 = vsub.f32 %v883, %v891
    %v894 = vmul.f32 %v892, %v892
    %v895 = vmul.f32 %v893, %v893
    %v896 = vsel %vm100, %v894, 0.0
    %897 = vadd.xlane.f32.xlu0 %v896
    %v898 = vpop.xlane.xlu0 %897
    %v899 = vsel %vm100, %v895, 0.0
    %900 = vadd.xlane.f32.xlu0 %v899
    %v901 = vpop.xlane.xlu0 %900
    %v902 = vmul.f32 %v898, %v113
    %v903 = vmul.f32 %v901, %v113
    %v904 = vadd.f32 %v902, 1e-05
    %v905 = vadd.f32 %v903, 1e-05
    %v906 = vrsqrt.pop %v904
    %v907 = vmul.f32 %v906, %v904
    %v908 = vmul.f32 %v907, %v906
    %v909 = vmul.f32 0.5, %v908
    %v910 = vsub.f32 1.5, %v909
    %v911 = vmul.f32 %v906, %v910
    %vm912 = vweird.f32 %v904
    %vm913 = vweird.f32 %v906
    %vm914 = vmor %vm912, %vm913
    %v915 = vsel %vm914, %v906, %v911
    %v916 = vrsqrt.pop %v905
    %v917 = vmul.f32 %v916, %v905
    %v918 = vmul.f32 %v917, %v916
    %v919 = vmul.f32 0.5, %v918
    %v920 = vsub.f32 1.5, %v919
    %v921 = vmul.f32 %v916, %v920
    %vm922 = vweird.f32 %v905
    %vm923 = vweird.f32 %v916
    %vm924 = vmor %vm922, %vm923
    %v925 = vsel %vm924, %v916, %v921
    %v926 = vmul.f32 %v892, %v915
    %v927 = vmul.f32 %v893, %v925
    %v928 = vperm.slane %v64, 1
    %v929 = vmul.f32 %v926, %v928
    %v930 = vmul.f32 %v927, %v928
    %v931 = vld [vmem:[%s5] sm:$0xff]
    %v932 = vld [vmem:[%s5 + $0x8] sm:$0xff]
    %v933 = vld [vmem:[%s5 + $0x10] sm:$0xff]
    %v934 = vld [vmem:[%s5 + $0x18] sm:$0xff]
    %v936 = vsel %vm100, %v929, 0
    %v939 = vsel %vm100, %v930, 0
    %941 = vmatpush.msra.mxu0 0.0
    %942 = vmatpush.msra.mxu0 0.0
    %943 = vmatpush.msra.mxu0 0.0
    %944 = vmatpush.msra.mxu0 0.0
    %945 = vmatpush.msra.mxu0 0.0
    %946 = vmatpush.msra.mxu0 0.0
    %947 = vmatpush.msra.mxu0 0.0
    %948 = vmatpush.msra.mxu0 0.0
    %949 = vmatpush.msra.mxu0 0.0
    %950 = vmatpush.msra.mxu0 0.0
    %951 = vmatpush.msra.mxu0 0.0
    %952 = vmatpush.msra.mxu0 0.0
    %953 = vmatpush.msra.mxu0 %v934
    %954 = vmatpush.msra.mxu0 %v933
    %955 = vmatpush.msra.mxu0 %v932
    %956 = vmatpush.msra.mxu0 %v931
    %957 = vmatmul.f32.gmra.mxu0 %v936
    %v958 = vpop.f32.mrf.mxu0
    %v959 = vadd.f32 0.0, %v958
    %960 = vmatmul.f32.gmra.mxu0 %v939
    %v961 = vpop.f32.mrf.mxu0
    %v962 = vadd.f32 0.0, %v961
    %963 = vdwg.mxu0
    %v964 = vmul.f32 %v959, 0.5
    %v965 = vmul.f32 %v962, 0.5
    %v966 = vmul.f32 %v959, 0.044715
    %v967 = vmul.f32 %v962, 0.044715
    %v968 = vmul.f32 %v966, %v959
    %v969 = vmul.f32 %v967, %v962
    %v970 = vmul.f32 %v968, %v959
    %v971 = vmul.f32 %v969, %v962
    %v972 = vadd.f32 %v959, %v970
    %v973 = vadd.f32 %v962, %v971
    %v974 = vmul.f32 %v972, 0.7978846
    %v975 = vmul.f32 %v973, 0.7978846
    %v976 = vtanh.pop %v974
    %v977 = vtanh.pop %v975
    %v978 = vadd.f32 %v976, 1.0
    %v979 = vadd.f32 %v977, 1.0
    %v980 = vmul.f32 %v964, %v978
    %v981 = vmul.f32 %v965, %v979
    %v982 = vld [vmem:[%s6] sm:$0xff]
    %v983 = vld [vmem:[%s6 + $0x8] sm:$0xff]
    %v984 = vld [vmem:[%s6 + $0x10] sm:$0xff]
    %v985 = vld [vmem:[%s6 + $0x18] sm:$0xff]
    %v986 = vld [vmem:[%s6 + $0x20] sm:$0xff]
    %v987 = vld [vmem:[%s6 + $0x28] sm:$0xff]
    %v988 = vld [vmem:[%s6 + $0x30] sm:$0xff]
    %v989 = vld [vmem:[%s6 + $0x38] sm:$0xff]
    %v990 = vld [vmem:[%s6 + $0x40] sm:$0xff]
    %v991 = vld [vmem:[%s6 + $0x48] sm:$0xff]
    %v992 = vld [vmem:[%s6 + $0x50] sm:$0xff]
    %v993 = vld [vmem:[%s6 + $0x58] sm:$0xff]
    %v994 = vld [vmem:[%s6 + $0x60] sm:$0xff]
    %v995 = vld [vmem:[%s6 + $0x68] sm:$0xff]
    %v996 = vld [vmem:[%s6 + $0x70] sm:$0xff]
    %v997 = vld [vmem:[%s6 + $0x78] sm:$0xff]
    %998 = vmatpush.msra.mxu0 %v997
    %999 = vmatpush.msra.mxu0 %v996
    %1000 = vmatpush.msra.mxu0 %v995
    %1001 = vmatpush.msra.mxu0 %v994
    %1002 = vmatpush.msra.mxu0 %v993
    %1003 = vmatpush.msra.mxu0 %v992
    %1004 = vmatpush.msra.mxu0 %v991
    %1005 = vmatpush.msra.mxu0 %v990
    %1006 = vmatpush.msra.mxu0 %v989
    %1007 = vmatpush.msra.mxu0 %v988
    %1008 = vmatpush.msra.mxu0 %v987
    %1009 = vmatpush.msra.mxu0 %v986
    %1010 = vmatpush.msra.mxu0 %v985
    %1011 = vmatpush.msra.mxu0 %v984
    %1012 = vmatpush.msra.mxu0 %v983
    %1013 = vmatpush.msra.mxu0 %v982
    %1014 = vmatmul.f32.gmra.mxu0 %v980
    %v1015 = vpop.f32.mrf.mxu0
    %v1016 = vadd.f32 0.0, %v1015
    %1017 = vmatmul.f32.gmra.mxu0 %v981
    %v1018 = vpop.f32.mrf.mxu0
    %v1019 = vadd.f32 0.0, %v1018
    %1020 = vdwg.mxu0
    %v1021 = vadd.f32 %v882, %v1016
    %v1022 = vadd.f32 %v883, %v1019
    %v1023 = vsel %vm100, %v1021, 0.0
    %1024 = vadd.xlane.f32.xlu0 %v1023
    %v1025 = vpop.xlane.xlu0 %1024
    %v1026 = vsel %vm100, %v1022, 0.0
    %1027 = vadd.xlane.f32.xlu0 %v1026
    %v1028 = vpop.xlane.xlu0 %1027
    %v1029 = vmul.f32 %v1025, %v113
    %v1030 = vmul.f32 %v1028, %v113
    %v1031 = vsub.f32 %v1021, %v1029
    %v1032 = vsub.f32 %v1022, %v1030
    %v1033 = vmul.f32 %v1031, %v1031
    %v1034 = vmul.f32 %v1032, %v1032
    %v1035 = vsel %vm100, %v1033, 0.0
    %1036 = vadd.xlane.f32.xlu0 %v1035
    %v1037 = vpop.xlane.xlu0 %1036
    %v1038 = vsel %vm100, %v1034, 0.0
    %1039 = vadd.xlane.f32.xlu0 %v1038
    %v1040 = vpop.xlane.xlu0 %1039
    %v1041 = vmul.f32 %v1037, %v113
    %v1042 = vmul.f32 %v1040, %v113
    %v1043 = vadd.f32 %v1041, 1e-05
    %v1044 = vadd.f32 %v1042, 1e-05
    %v1045 = vrsqrt.pop %v1043
    %v1046 = vmul.f32 %v1045, %v1043
    %v1047 = vmul.f32 %v1046, %v1045
    %v1048 = vmul.f32 0.5, %v1047
    %v1049 = vsub.f32 1.5, %v1048
    %v1050 = vmul.f32 %v1045, %v1049
    %vm1051 = vweird.f32 %v1043
    %vm1052 = vweird.f32 %v1045
    %vm1053 = vmor %vm1051, %vm1052
    %v1054 = vsel %vm1053, %v1045, %v1050
    %v1055 = vrsqrt.pop %v1044
    %v1056 = vmul.f32 %v1055, %v1044
    %v1057 = vmul.f32 %v1056, %v1055
    %v1058 = vmul.f32 0.5, %v1057
    %v1059 = vsub.f32 1.5, %v1058
    %v1060 = vmul.f32 %v1055, %v1059
    %vm1061 = vweird.f32 %v1044
    %vm1062 = vweird.f32 %v1055
    %vm1063 = vmor %vm1061, %vm1062
    %v1064 = vsel %vm1063, %v1055, %v1060
    %v1065 = vmul.f32 %v1031, %v1054
    %v1066 = vmul.f32 %v1032, %v1064
    %v1067 = vperm.slane %v64, 2
    %v1068 = vmul.f32 %v1065, %v1067
    %v1069 = vmul.f32 %v1066, %v1067
    %v1070 = vsel %vm70, %v195, 0
    %1072 = vmatpush.msra.mxu0 0.0
    %1073 = vmatpush.msra.mxu0 0.0
    %1074 = vmatpush.msra.mxu0 0.0
    %1075 = vmatpush.msra.mxu0 0.0
    %1076 = vmatpush.msra.mxu0 0.0
    %1077 = vmatpush.msra.mxu0 0.0
    %1078 = vmatpush.msra.mxu0 0.0
    %1079 = vmatpush.msra.mxu0 0.0
    %1080 = vmatpush.msra.mxu0 0.0
    %1081 = vmatpush.msra.mxu0 0.0
    %1082 = vmatpush.msra.mxu0 0.0
    %1083 = vmatpush.msra.mxu0 0.0
    %1084 = vmatpush.msra.mxu0 0.0
    %1085 = vmatpush.msra.mxu0 0.0
    %1086 = vmatpush.msra.mxu0 %v1069
    %1087 = vmatpush.msra.mxu0 %v1068
    %1088 = vmatmul.f32.gmra.mxu0 %v1070
    %v1089 = vpop.f32.mrf.mxu0
    %v1090 = vadd.f32 0.0, %v1089
    %1091 = vdwg.mxu0
    %v1092 = vld [vmem:[%s7] sm:$0xff]
    %v1093 = vld [vmem:[%s7 + $0x8] sm:$0xff]
    %v1094 = vld [vmem:[%s7 + $0x10] sm:$0xff]
    %v1095 = vld [vmem:[%s7 + $0x18] sm:$0xff]
    %v1097 = vsel %vm100, %v1090, 0
    %1099 = vmatpush.msra.mxu0 0.0
    %1100 = vmatpush.msra.mxu0 0.0
    %1101 = vmatpush.msra.mxu0 0.0
    %1102 = vmatpush.msra.mxu0 0.0
    %1103 = vmatpush.msra.mxu0 0.0
    %1104 = vmatpush.msra.mxu0 0.0
    %1105 = vmatpush.msra.mxu0 0.0
    %1106 = vmatpush.msra.mxu0 0.0
    %1107 = vmatpush.msra.mxu0 0.0
    %1108 = vmatpush.msra.mxu0 0.0
    %1109 = vmatpush.msra.mxu0 0.0
    %1110 = vmatpush.msra.mxu0 0.0
    %1111 = vmatpush.msra.mxu0 %v1095
    %1112 = vmatpush.msra.mxu0 %v1094
    %1113 = vmatpush.msra.mxu0 %v1093
    %1114 = vmatpush.msra.mxu0 %v1092
    %1115 = vmatmul.f32.gmra.mxu0 %v1097
    %v1116 = vpop.f32.mrf.mxu0
    %v1117 = vadd.f32 0.0, %v1116
    %1118 = vdwg.mxu0
    %1119 = vst [vmem:[#allocation7] sm:$0x3] %v1117
    // Predicated region
    $region42: #{tpu_custom_call.1} parent=1 // pred_check
      _
    $region43: #{tpu_custom_call.1} parent=1 // pred_check_branch
      %1121 = sbr.rel (0) target = $region45
    $region44: #{tpu_custom_call.1} parent=1 // pred_region
      %1123 = vsyncadd [#allocation4], 0
      %s1125 = sshll.u32 [#allocation7], 4
      %s1126 = int_to_ptr.vmem [resolvable:$true] %s1125
      %s1127 = sshll.u32 %s8, 4
      %s1128 = int_to_ptr.hbm [resolvable:$true] %s1127
      %1130 = dma.vmem_to_hbm [thread:$0]  %s1126, 32, %s1128, [#allocation4]
    $region45: #{tpu_custom_call.1} parent=1 // pred_fallthru
      _
    // Predicated region
    $region46: #{tpu_custom_call.1} parent=1 // pred_check
      _
    $region47: #{tpu_custom_call.1} parent=1 // pred_check_branch
      %1132 = sbr.rel (0) target = $region49
    $region48: #{tpu_custom_call.1} parent=1 // pred_region
      %1134 = dma.done [#allocation4], 32
    $region49: #{tpu_custom_call.1} parent=1 // pred_fallthru
      _
    %1135 = vsyncpa [#allocation3], 1
    %1136 = vsyncpa [#allocation6], 1
    %1137 = vsyncpa [#allocation4], 1

</llo_original>
